<compile_context>
chip_gen: v7x
topology: tpu7x:2x2x1
jax: 0.10.0
libtpu: 0.0.40
codegen_flags: <defaults>
</compile_context>

<pallas_src>
import functools

import jax
import jax.numpy as jnp
from jax.experimental import pallas as pl
from jax.experimental.pallas import tpu as pltpu


def _round_up(v, m):
    return (v + m - 1) // m * m


def _patch_merging_kernel(Bt, HWp, HoWo, Wo,
                          x_ref, cm_ref, rm_ref,
                          w1_ref, b1_ref, w2_ref, b2_ref,
                          wse1_ref, bse1_ref, wse2_ref, bse2_ref,
                          w3_ref, b3_ref, o_ref, h1_ref):
    f32 = jnp.float32
    hid_p = h1_ref.shape[-1]
    out_p = o_ref.shape[-1]

    # Hoisted boundary masks (conv2's implicit zero padding), broadcast once
    # per grid step and reused by every image in the batch block.
    cm = jnp.broadcast_to(cm_ref[...], (HWp, hid_p))    # 0 where j == 0
    rm = jnp.broadcast_to(rm_ref[...], (HWp, hid_p))    # 0 where i == 0
    crm = cm * rm                                       # 0 where i == 0 or j == 0
    # Hoisted depthwise weight rows (row index = kh*3 + kw) and biases.
    w2 = w2_ref[...]
    w2r = [w2[k:k + 1, :] for k in range(9)]
    b1 = b1_ref[...]
    b2 = b2_ref[...]
    b3 = b3_ref[...]
    inv_hw = 1.0 / HoWo

    for b in range(Bt):                     # statically unrolled batch block
        # ---- conv1 (1x1 + fused BN) + ReLU over the four phase planes ------
        # x_ref[b]: [4*HWp, Cin_p] bf16, phase-major (P_ee | P_eo | P_oe | P_oo),
        # plane pitch HWp (>= HoWo, multiple of 8), rows k = i*Wo + j.
        h1 = jnp.dot(x_ref[b], w1_ref[...], preferred_element_type=f32)
        h1_ref[...] = jnp.maximum(h1 + b1, 0.0).astype(h1_ref.dtype)   # bf16

        # ---- conv2: depthwise 3x3, stride 2, pad 1 (+ fused BN) + ReLU ------
        # Aligned plane loads (all starts are multiples of 8), one f32 upcast
        # per plane, shifted taps realised with XLU rolls + grouped masks.
        p_ee = h1_ref[pl.ds(0 * HWp, HWp), :].astype(f32)
        p_eo = h1_ref[pl.ds(1 * HWp, HWp), :].astype(f32)
        p_oe = h1_ref[pl.ds(2 * HWp, HWp), :].astype(f32)
        p_oo = h1_ref[pl.ds(3 * HWp, HWp), :].astype(f32)
        r1_eo = pltpu.roll(p_eo, shift=1, axis=0)        # x(2i,   2j-1)
        r1_oo = pltpu.roll(p_oo, shift=1, axis=0)        # x(2i+1, 2j-1)
        rW_oe = pltpu.roll(p_oe, shift=Wo, axis=0)       # x(2i-1, 2j)
        rW_oo = pltpu.roll(p_oo, shift=Wo, axis=0)       # x(2i-1, 2j+1)
        rW1_oo = pltpu.roll(rW_oo, shift=1, axis=0)      # x(2i-1, 2j-1)

        dw = (p_ee * w2r[4] + p_eo * w2r[5]              # (1,1), (1,2)
              + p_oe * w2r[7] + p_oo * w2r[8]            # (2,1), (2,2)
              + cm * (r1_eo * w2r[3] + r1_oo * w2r[6])   # (1,0), (2,0)
              + rm * (rW_oe * w2r[1] + rW_oo * w2r[2])   # (0,1), (0,2)
              + crm * (rW1_oo * w2r[0]))                 # (0,0)
        dw = jnp.maximum(dw + b2, 0.0)                   # [HWp, hid_p] f32
        dwv = dw if HWp == HoWo else dw[:HoWo, :]        # valid rows only

        # ---- SqueezeExcite ---------------------------------------------------
        se = jnp.sum(dwv, axis=0, keepdims=True) * inv_hw          # [1, hid_p]
        se = jnp.dot(se.astype(wse1_ref.dtype), wse1_ref[...],
                     preferred_element_type=f32)
        se = jnp.maximum(se + bse1_ref[...], 0.0)                  # [1, rd_p]
        se = jnp.dot(se.astype(wse2_ref.dtype), wse2_ref[...],
                     preferred_element_type=f32) + bse2_ref[...]
        gate = jax.nn.sigmoid(se)                                  # [1, hid_p]

        # ---- conv3 (1x1 + fused BN); SE gate folded into the cheaper side ---
        if HoWo >= out_p:
            # Scale w3's hid rows by the per-image gate (hid_p*out_p muls).
            w3g = w3_ref[...] * jnp.transpose(gate).astype(w3_ref.dtype)
            out = jnp.dot(dwv.astype(w3_ref.dtype), w3g,
                          preferred_element_type=f32)
        else:
            # Scale dw by the gate (HoWo*hid_p muls).
            out = jnp.dot((dwv * gate).astype(w3_ref.dtype), w3_ref[...],
                          preferred_element_type=f32)
        o_ref[b] = (out + b3).astype(o_ref.dtype)


def patch_merging_pallas(x_nchw, params, *, batch_block=8):
    B, Cin, H, W = x_nchw.shape
    assert H % 2 == 0 and W % 2 == 0, "even spatial dims expected"
    Ho, Wo = H // 2, W // 2
    HoWo = Ho * Wo
    HWp = _round_up(HoWo, 8)                 # 8-aligned phase-plane pitch
    hid = params['w1'].shape[1]
    rd = params['wse1'].shape[1]
    out_dim = params['w3'].shape[1]

    Cin_p = _round_up(Cin, 128)              # lane-dense K for conv1
    hid_p = _round_up(hid, 128)              # lane-dense h1 / dw / SE
    rd_p = _round_up(rd, 128)                # lane-dense SE bottleneck
    out_p = _round_up(out_dim, 128)          # lane-dense output stores

    Bt = max(1, min(batch_block, B))         # images per grid step
    Bp = _round_up(B, Bt)

    bf16, f32 = jnp.bfloat16, jnp.float32

    # NCHW -> space-to-depth, phase-major [Bp, 4*HWp, Cin_p] (zero padded):
    # row (p*HWp + i*Wo + j) holds x[:, :, 2i + p//2, 2j + p%2].
    x = jnp.transpose(x_nchw, (0, 2, 3, 1))                     # NHWC
    x = x.reshape(B, Ho, 2, Wo, 2, Cin)
    x = jnp.transpose(x, (0, 2, 4, 1, 3, 5))                    # [B,2,2,Ho,Wo,C]
    x = x.reshape(B, 4, HoWo, Cin)
    x = jnp.pad(x, ((0, Bp - B), (0, 0), (0, HWp - HoWo), (0, Cin_p - Cin)))
    x = x.reshape(Bp, 4 * HWp, Cin_p).astype(bf16)

    # Boundary masks for the flattened phase planes (conv2's zero padding).
    k = jnp.arange(HWp, dtype=jnp.int32)
    cm = (k % Wo != 0).astype(f32).reshape(HWp, 1)   # 0 where j == 0
    rm = (k >= Wo).astype(f32).reshape(HWp, 1)       # 0 where i == 0

    def pad2(a, rows, cols, dtype):
        out = jnp.zeros((rows, cols), dtype)
        return out.at[:a.shape[0], :a.shape[1]].set(a.astype(dtype))

    def padrow(v, cols, dtype=f32):
        return pad2(v.reshape(1, -1), 1, cols, dtype)

    w1 = pad2(params['w1'], Cin_p, hid_p, bf16)
    b1 = padrow(params['b1'], hid_p)
    w2 = pad2(params['w2'], 9, hid_p, f32)           # depthwise stays f32 (VPU)
    b2 = padrow(params['b2'], hid_p)
    wse1 = pad2(params['wse1'], hid_p, rd_p, bf16)
    bse1 = padrow(params['bse1'], rd_p)
    wse2 = pad2(params['wse2'], rd_p, hid_p, bf16)
    bse2 = padrow(params['bse2'], hid_p)
    w3 = pad2(params['w3'], hid_p, out_p, bf16)
    b3 = padrow(params['b3'], out_p)

    kernel = functools.partial(_patch_merging_kernel, Bt, HWp, HoWo, Wo)

    def full(arr):
        nd = arr.ndim
        return pl.BlockSpec(arr.shape, lambda b: (0,) * nd)

    # Explicit VMEM budget: double-buffered x/out blocks, resident weights,
    # the bf16 h1 scratch and generous headroom for f32 depthwise temporaries.
    weights_bytes = sum(int(a.size) * a.dtype.itemsize
                        for a in (w1, b1, w2, b2, wse1, bse1, wse2, bse2,
                                  w3, b3, cm, rm))
    working = (2 * Bt * 4 * HWp * Cin_p * 2          # x block (double-buffered)
               + 2 * Bt * HoWo * out_p * 2           # out block (double-buffered)
               + 2 * weights_bytes
               + 4 * HWp * hid_p * 2                 # h1 scratch (bf16)
               + 14 * HWp * hid_p * 4)               # f32 depthwise temporaries
    vmem_limit = int(min(working + (8 << 20), 64 << 20))

    out = pl.pallas_call(
        kernel,
        out_shape=jax.ShapeDtypeStruct((Bp, HoWo, out_p), bf16),
        grid_spec=pltpu.PrefetchScalarGridSpec(
            num_scalar_prefetch=0,
            grid=(Bp // Bt,),
            in_specs=[
                pl.BlockSpec((Bt, 4 * HWp, Cin_p), lambda b: (b, 0, 0)),  # x
                full(cm), full(rm),                                       # masks
                full(w1), full(b1),                                       # conv1
                full(w2), full(b2),                                       # conv2
                full(wse1), full(bse1), full(wse2), full(bse2),           # SE
                full(w3), full(b3),                                       # conv3
            ],
            out_specs=pl.BlockSpec((Bt, HoWo, out_p), lambda b: (b, 0, 0)),
            scratch_shapes=[pltpu.VMEM((4 * HWp, hid_p), bf16)],          # h1
        ),
        compiler_params=pltpu.CompilerParams(
            dimension_semantics=("parallel",),
            vmem_limit_bytes=vmem_limit),
    )(x, cm, rm, w1, b1, w2, b2, wse1, bse1, wse2, bse2, w3, b3)

    out = out[:B, :, :out_dim].reshape(B, Ho, Wo, out_dim)
    return jnp.transpose(out, (0, 3, 1, 2))          # NCHW, bf16


def _make_divisible(v, divisor=8):
    new_v = max(divisor, int(v + divisor / 2) // divisor * divisor)
    if new_v < 0.9 * v:
        new_v += divisor
    return new_v


def make_params(key, dim, out_dim):
    """Deterministic synthetic parameters matching PatchMerging.__init__ shapes."""
    hid = dim * 4
    rd = _make_divisible(hid * 0.25)      # timm SqueezeExcite rd_ratio=0.25
    ks = jax.random.split(key, 10)
    eps = 1e-5

    def conv_bn(kw, kstats, shape):
        # conv weight (bias=False) + eval-mode BatchNorm folded to (scale, bias).
        w = jax.random.normal(kw, shape, jnp.float32) * 0.3
        k1, k2 = jax.random.split(kstats)
        gamma = jnp.ones((shape[-1],), jnp.float32)   # bn_weight_init = 1
        beta = jnp.zeros((shape[-1],), jnp.float32)   # bn bias init = 0
        mean = jax.random.normal(k1, (shape[-1],), jnp.float32) * 0.1
        var = jax.random.uniform(k2, (shape[-1],), jnp.float32,
                                 minval=0.5, maxval=1.5)
        scale = gamma / jnp.sqrt(var + eps)
        return w * scale, beta - mean * scale

    w1, b1 = conv_bn(ks[0], ks[1], (dim, hid))        # 1x1: [Cin, hid]
    w2, b2 = conv_bn(ks[2], ks[3], (9, hid))          # dw 3x3: [kh*3+kw, hid]
    w3, b3 = conv_bn(ks[4], ks[5], (hid, out_dim))    # 1x1: [hid, out]
    wse1 = jax.random.normal(ks[6], (hid, rd), jnp.float32) * 0.3
    bse1 = jax.random.normal(ks[7], (rd,), jnp.float32) * 0.1
    wse2 = jax.random.normal(ks[8], (rd, hid), jnp.float32) * 0.3
    bse2 = jax.random.normal(ks[9], (hid,), jnp.float32) * 0.1
    return dict(w1=w1, b1=b1, w2=w2, b2=b2, w3=w3, b3=b3,
                wse1=wse1, bse1=bse1, wse2=wse2, bse2=bse2)


def patch_merging_reference(x_nchw, params):
    """Pure-JAX reference (NCHW in/out) with the kernel's numerics policy:
    bf16 matmul inputs with f32 accumulation, bf16 storage of the conv1
    activation, everything else in f32 (final output left in f32)."""
    B, Cin, H, W = x_nchw.shape
    hid = params['w1'].shape[1]
    bf16, f32 = jnp.bfloat16, jnp.float32
    x = jnp.transpose(x_nchw, (0, 2, 3, 1)).astype(bf16)               # NHWC
    h = jnp.einsum('bhwc,cd->bhwd', x, params['w1'].astype(bf16),
                   preferred_element_type=f32)
    h = jnp.maximum(h + params['b1'], 0.0).astype(bf16).astype(f32)
    hp = jnp.pad(h, ((0, 0), (1, 1), (1, 1), (0, 0)))
    w2 = params['w2'].reshape(3, 3, hid)
    dw = jnp.zeros((B, H // 2, W // 2, hid), f32)
    for kh in range(3):
        for kw in range(3):
            dw = dw + hp[:, kh:kh + H:2, kw:kw + W:2, :] * w2[kh, kw]
    dw = jnp.maximum(dw + params['b2'], 0.0)
    se = dw.mean(axis=(1, 2), keepdims=True)
    se = jnp.einsum('bhwc,cr->bhwr', se.astype(bf16),
                    params['wse1'].astype(bf16), preferred_element_type=f32)
    se = jnp.maximum(se + params['bse1'], 0.0)
    se = jnp.einsum('bhwr,rc->bhwc', se.astype(bf16),
                    params['wse2'].astype(bf16), preferred_element_type=f32)
    se = se + params['bse2']
    dw = dw * jax.nn.sigmoid(se)
    out = jnp.einsum('bhwc,co->bhwo', dw.astype(bf16),
                     params['w3'].astype(bf16), preferred_element_type=f32)
    out = out + params['b3']
    return jnp.transpose(out, (0, 3, 1, 2))                            # NCHW


if __name__ == "__main__":
    key = jax.random.PRNGKey(0)
    kx, kp = jax.random.split(key)

    B, dim, H, W = 2, 4, 16, 16      # small shapes; hid_dim = 4*dim = 16
    out_dim = 8

    x = jax.random.normal(kx, (B, dim, H, W), jnp.float32)
    params = make_params(kp, dim, out_dim)

    y = jax.block_until_ready(patch_merging_pallas(x, params))
    y_ref = jax.block_until_ready(patch_merging_reference(x, params))

    assert y.shape == (B, out_dim, H // 2, W // 2), y.shape
    yf = y.astype(jnp.float32)
    if not jnp.allclose(yf, y_ref, rtol=2e-2, atol=2e-2):
        max_err = float(jnp.max(jnp.abs(yf - y_ref)))
        raise AssertionError(f"mismatch vs reference, max abs err = {max_err}")

    print("KERNEL_OK")
</pallas_src>

<mosaic_0001>
module attributes {stable_mosaic.version = 11 : i64} {
  func.func @_patch_merging_kernel(%arg0: i32, %arg1: memref<2x256x128xbf16, #tpu.memory_space<vmem>>, %arg2: memref<64x1xf32, #tpu.memory_space<vmem>>, %arg3: memref<64x1xf32, #tpu.memory_space<vmem>>, %arg4: memref<128x128xbf16, #tpu.memory_space<vmem>>, %arg5: memref<1x128xf32, #tpu.memory_space<vmem>>, %arg6: memref<9x128xf32, #tpu.memory_space<vmem>>, %arg7: memref<1x128xf32, #tpu.memory_space<vmem>>, %arg8: memref<128x128xbf16, #tpu.memory_space<vmem>>, %arg9: memref<1x128xf32, #tpu.memory_space<vmem>>, %arg10: memref<128x128xbf16, #tpu.memory_space<vmem>>, %arg11: memref<1x128xf32, #tpu.memory_space<vmem>>, %arg12: memref<128x128xbf16, #tpu.memory_space<vmem>>, %arg13: memref<1x128xf32, #tpu.memory_space<vmem>>, %arg14: memref<2x64x128xbf16, #tpu.memory_space<vmem>>, %arg15: memref<256x128xbf16, #tpu.memory_space<vmem>>) attributes {dimension_semantics = [#tpu.dimension_semantics<parallel>], iteration_bounds = array<i64: 1>, scalar_prefetch = 0 : i64, scratch_operands = 1 : i64, tpu.core_type = #tpu.core_type<tc>, window_params = [{transform_indices = @transform_0, window_bounds = array<i64: 2, 256, 128>}, {pipeline_mode = #tpu.pipeline_mode<synchronous>, transform_indices = @transform_1, window_bounds = array<i64: 64, 1>}, {pipeline_mode = #tpu.pipeline_mode<synchronous>, transform_indices = @transform_2, window_bounds = array<i64: 64, 1>}, {pipeline_mode = #tpu.pipeline_mode<synchronous>, transform_indices = @transform_3, window_bounds = array<i64: 128, 128>}, {pipeline_mode = #tpu.pipeline_mode<synchronous>, transform_indices = @transform_4, window_bounds = array<i64: 1, 128>}, {pipeline_mode = #tpu.pipeline_mode<synchronous>, transform_indices = @transform_5, window_bounds = array<i64: 9, 128>}, {pipeline_mode = #tpu.pipeline_mode<synchronous>, transform_indices = @transform_6, window_bounds = array<i64: 1, 128>}, {pipeline_mode = #tpu.pipeline_mode<synchronous>, transform_indices = @transform_7, window_bounds = array<i64: 128, 128>}, {pipeline_mode = #tpu.pipeline_mode<synchronous>, transform_indices = @transform_8, window_bounds = array<i64: 1, 128>}, {pipeline_mode = #tpu.pipeline_mode<synchronous>, transform_indices = @transform_9, window_bounds = array<i64: 128, 128>}, {pipeline_mode = #tpu.pipeline_mode<synchronous>, transform_indices = @transform_10, window_bounds = array<i64: 1, 128>}, {pipeline_mode = #tpu.pipeline_mode<synchronous>, transform_indices = @transform_11, window_bounds = array<i64: 128, 128>}, {pipeline_mode = #tpu.pipeline_mode<synchronous>, transform_indices = @transform_12, window_bounds = array<i64: 1, 128>}, {transform_indices = @transform_13, window_bounds = array<i64: 2, 64, 128>}]} {
    %c0 = arith.constant 0 : index
    %c0_0 = arith.constant 0 : index
    %0 = vector.load %arg2[%c0, %c0_0] : memref<64x1xf32, #tpu.memory_space<vmem>>, vector<64x1xf32>
    %1 = vector.shape_cast %0 : vector<64x1xf32> to vector<64x1xf32>
    %2 = vector.broadcast %1 : vector<64x1xf32> to vector<64x128xf32>
    %c0_1 = arith.constant 0 : index
    %c0_2 = arith.constant 0 : index
    %3 = vector.load %arg3[%c0_1, %c0_2] : memref<64x1xf32, #tpu.memory_space<vmem>>, vector<64x1xf32>
    %4 = vector.shape_cast %3 : vector<64x1xf32> to vector<64x1xf32>
    %5 = vector.broadcast %4 : vector<64x1xf32> to vector<64x128xf32>
    %6 = arith.mulf %2, %5 : vector<64x128xf32>
    %c0_3 = arith.constant 0 : index
    %c0_4 = arith.constant 0 : index
    %7 = vector.load %arg6[%c0_3, %c0_4] : memref<9x128xf32, #tpu.memory_space<vmem>>, vector<9x128xf32>
    %8 = vector.extract_strided_slice %7 {offsets = [0, 0], sizes = [1, 128], strides = [1, 1]} : vector<9x128xf32> to vector<1x128xf32>
    %9 = vector.extract_strided_slice %7 {offsets = [1, 0], sizes = [1, 128], strides = [1, 1]} : vector<9x128xf32> to vector<1x128xf32>
    %10 = vector.extract_strided_slice %7 {offsets = [2, 0], sizes = [1, 128], strides = [1, 1]} : vector<9x128xf32> to vector<1x128xf32>
    %11 = vector.extract_strided_slice %7 {offsets = [3, 0], sizes = [1, 128], strides = [1, 1]} : vector<9x128xf32> to vector<1x128xf32>
    %12 = vector.extract_strided_slice %7 {offsets = [4, 0], sizes = [1, 128], strides = [1, 1]} : vector<9x128xf32> to vector<1x128xf32>
    %13 = vector.extract_strided_slice %7 {offsets = [5, 0], sizes = [1, 128], strides = [1, 1]} : vector<9x128xf32> to vector<1x128xf32>
    %14 = vector.extract_strided_slice %7 {offsets = [6, 0], sizes = [1, 128], strides = [1, 1]} : vector<9x128xf32> to vector<1x128xf32>
    %15 = vector.extract_strided_slice %7 {offsets = [7, 0], sizes = [1, 128], strides = [1, 1]} : vector<9x128xf32> to vector<1x128xf32>
    %16 = vector.extract_strided_slice %7 {offsets = [8, 0], sizes = [1, 128], strides = [1, 1]} : vector<9x128xf32> to vector<1x128xf32>
    %c0_5 = arith.constant 0 : index
    %c0_6 = arith.constant 0 : index
    %17 = vector.load %arg5[%c0_5, %c0_6] : memref<1x128xf32, #tpu.memory_space<vmem>>, vector<1x128xf32>
    %c0_7 = arith.constant 0 : index
    %c0_8 = arith.constant 0 : index
    %18 = vector.load %arg7[%c0_7, %c0_8] : memref<1x128xf32, #tpu.memory_space<vmem>>, vector<1x128xf32>
    %c0_9 = arith.constant 0 : index
    %c0_10 = arith.constant 0 : index
    %19 = vector.load %arg13[%c0_9, %c0_10] : memref<1x128xf32, #tpu.memory_space<vmem>>, vector<1x128xf32>
    %c0_11 = arith.constant 0 : index
    %c0_12 = arith.constant 0 : index
    %c0_13 = arith.constant 0 : index
    %20 = vector.load %arg1[%c0_11, %c0_12, %c0_13] : memref<2x256x128xbf16, #tpu.memory_space<vmem>>, vector<1x256x128xbf16>
    %21 = vector.shape_cast %20 : vector<1x256x128xbf16> to vector<256x128xbf16>
    %c0_14 = arith.constant 0 : index
    %c0_15 = arith.constant 0 : index
    %22 = vector.load %arg4[%c0_14, %c0_15] : memref<128x128xbf16, #tpu.memory_space<vmem>>, vector<128x128xbf16>
    %cst = arith.constant dense<0.000000e+00> : vector<256x128xf32>
    %23 = tpu.matmul %21, %22, %cst {dimension_numbers = #tpu.dot_dimension_numbers<[1], [0], [0], [1], [0, 0, 1, 1], [], []>} : vector<256x128xbf16>, vector<128x128xbf16>, vector<256x128xf32> -> vector<256x128xf32>
    %24 = vector.broadcast %17 : vector<1x128xf32> to vector<256x128xf32>
    %25 = arith.addf %23, %24 : vector<256x128xf32>
    %cst_16 = arith.constant 0.000000e+00 : f32
    %26 = vector.broadcast %cst_16 : f32 to vector<256x128xf32>
    %27 = arith.maximumf %25, %26 : vector<256x128xf32>
    %28 = arith.truncf %27 : vector<256x128xf32> to vector<256x128xbf16>
    %c0_17 = arith.constant 0 : index
    %c0_18 = arith.constant 0 : index
    %29 = vector.load %arg15[%c0_17, %c0_18] : memref<256x128xbf16, #tpu.memory_space<vmem>>, vector<256x128xbf16>
    tpu.vector_store %arg15[%c0_17, %c0_18], %28 {strides = array<i32>} : memref<256x128xbf16, #tpu.memory_space<vmem>>, vector<256x128xbf16>,
    %c0_19 = arith.constant 0 : index
    %c0_20 = arith.constant 0 : index
    %30 = vector.load %arg15[%c0_19, %c0_20] : memref<256x128xbf16, #tpu.memory_space<vmem>>, vector<64x128xbf16>
    %31 = arith.extf %30 : vector<64x128xbf16> to vector<64x128xf32>
    %c64 = arith.constant 64 : index
    %c0_21 = arith.constant 0 : index
    %32 = vector.load %arg15[%c64, %c0_21] : memref<256x128xbf16, #tpu.memory_space<vmem>>, vector<64x128xbf16>
    %33 = arith.extf %32 : vector<64x128xbf16> to vector<64x128xf32>
    %c128 = arith.constant 128 : index
    %c0_22 = arith.constant 0 : index
    %34 = vector.load %arg15[%c128, %c0_22] : memref<256x128xbf16, #tpu.memory_space<vmem>>, vector<64x128xbf16>
    %35 = arith.extf %34 : vector<64x128xbf16> to vector<64x128xf32>
    %c192 = arith.constant 192 : index
    %c0_23 = arith.constant 0 : index
    %36 = vector.load %arg15[%c192, %c0_23] : memref<256x128xbf16, #tpu.memory_space<vmem>>, vector<64x128xbf16>
    %37 = arith.extf %36 : vector<64x128xbf16> to vector<64x128xf32>
    %c1_i32 = arith.constant 1 : i32
    %38 = tpu.dynamic_rotate %33 by %c1_i32 dim 0 : vector<64x128xf32>, i32 -> vector<64x128xf32>
    %c1_i32_24 = arith.constant 1 : i32
    %39 = tpu.dynamic_rotate %37 by %c1_i32_24 dim 0 : vector<64x128xf32>, i32 -> vector<64x128xf32>
    %c8_i32 = arith.constant 8 : i32
    %40 = tpu.dynamic_rotate %35 by %c8_i32 dim 0 : vector<64x128xf32>, i32 -> vector<64x128xf32>
    %c8_i32_25 = arith.constant 8 : i32
    %41 = tpu.dynamic_rotate %37 by %c8_i32_25 dim 0 : vector<64x128xf32>, i32 -> vector<64x128xf32>
    %c1_i32_26 = arith.constant 1 : i32
    %42 = tpu.dynamic_rotate %41 by %c1_i32_26 dim 0 : vector<64x128xf32>, i32 -> vector<64x128xf32>
    %43 = vector.broadcast %12 : vector<1x128xf32> to vector<64x128xf32>
    %44 = arith.mulf %31, %43 : vector<64x128xf32>
    %45 = vector.broadcast %13 : vector<1x128xf32> to vector<64x128xf32>
    %46 = arith.mulf %33, %45 : vector<64x128xf32>
    %47 = arith.addf %44, %46 : vector<64x128xf32>
    %48 = vector.broadcast %15 : vector<1x128xf32> to vector<64x128xf32>
    %49 = arith.mulf %35, %48 : vector<64x128xf32>
    %50 = arith.addf %47, %49 : vector<64x128xf32>
    %51 = vector.broadcast %16 : vector<1x128xf32> to vector<64x128xf32>
    %52 = arith.mulf %37, %51 : vector<64x128xf32>
    %53 = arith.addf %50, %52 : vector<64x128xf32>
    %54 = vector.broadcast %11 : vector<1x128xf32> to vector<64x128xf32>
    %55 = arith.mulf %38, %54 : vector<64x128xf32>
    %56 = vector.broadcast %14 : vector<1x128xf32> to vector<64x128xf32>
    %57 = arith.mulf %39, %56 : vector<64x128xf32>
    %58 = arith.addf %55, %57 : vector<64x128xf32>
    %59 = arith.mulf %2, %58 : vector<64x128xf32>
    %60 = arith.addf %53, %59 : vector<64x128xf32>
    %61 = vector.broadcast %9 : vector<1x128xf32> to vector<64x128xf32>
    %62 = arith.mulf %40, %61 : vector<64x128xf32>
    %63 = vector.broadcast %10 : vector<1x128xf32> to vector<64x128xf32>
    %64 = arith.mulf %41, %63 : vector<64x128xf32>
    %65 = arith.addf %62, %64 : vector<64x128xf32>
    %66 = arith.mulf %5, %65 : vector<64x128xf32>
    %67 = arith.addf %60, %66 : vector<64x128xf32>
    %68 = vector.broadcast %8 : vector<1x128xf32> to vector<64x128xf32>
    %69 = arith.mulf %42, %68 : vector<64x128xf32>
    %70 = arith.mulf %6, %69 : vector<64x128xf32>
    %71 = arith.addf %67, %70 : vector<64x128xf32>
    %72 = vector.broadcast %18 : vector<1x128xf32> to vector<64x128xf32>
    %73 = arith.addf %71, %72 : vector<64x128xf32>
    %cst_27 = arith.constant 0.000000e+00 : f32
    %74 = vector.broadcast %cst_27 : f32 to vector<64x128xf32>
    %75 = arith.maximumf %73, %74 : vector<64x128xf32>
    %cst_28 = arith.constant dense<0.000000e+00> : vector<128xf32>
    %76 = vector.multi_reduction <add>, %75, %cst_28 [0] : vector<64x128xf32> to vector<128xf32>
    %77 = vector.shape_cast %76 : vector<128xf32> to vector<1x128xf32>
    %cst_29 = arith.constant 1.562500e-02 : f32
    %78 = vector.broadcast %cst_29 : f32 to vector<1x128xf32>
    %79 = arith.mulf %77, %78 : vector<1x128xf32>
    %80 = arith.truncf %79 : vector<1x128xf32> to vector<1x128xbf16>
    %c0_30 = arith.constant 0 : index
    %c0_31 = arith.constant 0 : index
    %81 = vector.load %arg8[%c0_30, %c0_31] : memref<128x128xbf16, #tpu.memory_space<vmem>>, vector<128x128xbf16>
    %cst_32 = arith.constant dense<0.000000e+00> : vector<1x128xf32>
    %82 = tpu.matmul %80, %81, %cst_32 {dimension_numbers = #tpu.dot_dimension_numbers<[1], [0], [0], [1], [0, 0, 1, 1], [], []>} : vector<1x128xbf16>, vector<128x128xbf16>, vector<1x128xf32> -> vector<1x128xf32>
    %c0_33 = arith.constant 0 : index
    %c0_34 = arith.constant 0 : index
    %83 = vector.load %arg9[%c0_33, %c0_34] : memref<1x128xf32, #tpu.memory_space<vmem>>, vector<1x128xf32>
    %84 = arith.addf %82, %83 : vector<1x128xf32>
    %cst_35 = arith.constant 0.000000e+00 : f32
    %85 = vector.broadcast %cst_35 : f32 to vector<1x128xf32>
    %86 = arith.maximumf %84, %85 : vector<1x128xf32>
    %87 = arith.truncf %86 : vector<1x128xf32> to vector<1x128xbf16>
    %c0_36 = arith.constant 0 : index
    %c0_37 = arith.constant 0 : index
    %88 = vector.load %arg10[%c0_36, %c0_37] : memref<128x128xbf16, #tpu.memory_space<vmem>>, vector<128x128xbf16>
    %cst_38 = arith.constant dense<0.000000e+00> : vector<1x128xf32>
    %89 = tpu.matmul %87, %88, %cst_38 {dimension_numbers = #tpu.dot_dimension_numbers<[1], [0], [0], [1], [0, 0, 1, 1], [], []>} : vector<1x128xbf16>, vector<128x128xbf16>, vector<1x128xf32> -> vector<1x128xf32>
    %c0_39 = arith.constant 0 : index
    %c0_40 = arith.constant 0 : index
    %90 = vector.load %arg11[%c0_39, %c0_40] : memref<1x128xf32, #tpu.memory_space<vmem>>, vector<1x128xf32>
    %91 = arith.addf %89, %90 : vector<1x128xf32>
    %92 = arith.negf %91 : vector<1x128xf32>
    %93 = math.exp %92 : vector<1x128xf32>
    %cst_41 = arith.constant 1.000000e+00 : f32
    %94 = vector.broadcast %cst_41 : f32 to vector<1x128xf32>
    %95 = arith.addf %94, %93 : vector<1x128xf32>
    %96 = arith.divf %94, %95 : vector<1x128xf32>
    %97 = vector.broadcast %96 : vector<1x128xf32> to vector<64x128xf32>
    %98 = arith.mulf %75, %97 : vector<64x128xf32>
    %99 = arith.truncf %98 : vector<64x128xf32> to vector<64x128xbf16>
    %c0_42 = arith.constant 0 : index
    %c0_43 = arith.constant 0 : index
    %100 = vector.load %arg12[%c0_42, %c0_43] : memref<128x128xbf16, #tpu.memory_space<vmem>>, vector<128x128xbf16>
    %cst_44 = arith.constant dense<0.000000e+00> : vector<64x128xf32>
    %101 = tpu.matmul %99, %100, %cst_44 {dimension_numbers = #tpu.dot_dimension_numbers<[1], [0], [0], [1], [0, 0, 1, 1], [], []>} : vector<64x128xbf16>, vector<128x128xbf16>, vector<64x128xf32> -> vector<64x128xf32>
    %102 = vector.broadcast %19 : vector<1x128xf32> to vector<64x128xf32>
    %103 = arith.addf %101, %102 : vector<64x128xf32>
    %104 = arith.truncf %103 : vector<64x128xf32> to vector<64x128xbf16>
    %c0_45 = arith.constant 0 : index
    %c0_46 = arith.constant 0 : index
    %c0_47 = arith.constant 0 : index
    %105 = vector.load %arg14[%c0_45, %c0_46, %c0_47] : memref<2x64x128xbf16, #tpu.memory_space<vmem>>, vector<1x64x128xbf16>
    %106 = vector.shape_cast %105 : vector<1x64x128xbf16> to vector<64x128xbf16>
    %107 = vector.shape_cast %104 : vector<64x128xbf16> to vector<1x64x128xbf16>
    tpu.vector_store %arg14[%c0_45, %c0_46, %c0_47], %107 {strides = array<i32>} : memref<2x64x128xbf16, #tpu.memory_space<vmem>>, vector<1x64x128xbf16>,
    %c1 = arith.constant 1 : index
    %c0_48 = arith.constant 0 : index
    %c0_49 = arith.constant 0 : index
    %108 = vector.load %arg1[%c1, %c0_48, %c0_49] : memref<2x256x128xbf16, #tpu.memory_space<vmem>>, vector<1x256x128xbf16>
    %109 = vector.shape_cast %108 : vector<1x256x128xbf16> to vector<256x128xbf16>
    %c0_50 = arith.constant 0 : index
    %c0_51 = arith.constant 0 : index
    %110 = vector.load %arg4[%c0_50, %c0_51] : memref<128x128xbf16, #tpu.memory_space<vmem>>, vector<128x128xbf16>
    %cst_52 = arith.constant dense<0.000000e+00> : vector<256x128xf32>
    %111 = tpu.matmul %109, %110, %cst_52 {dimension_numbers = #tpu.dot_dimension_numbers<[1], [0], [0], [1], [0, 0, 1, 1], [], []>} : vector<256x128xbf16>, vector<128x128xbf16>, vector<256x128xf32> -> vector<256x128xf32>
    %112 = vector.broadcast %17 : vector<1x128xf32> to vector<256x128xf32>
    %113 = arith.addf %111, %112 : vector<256x128xf32>
    %cst_53 = arith.constant 0.000000e+00 : f32
    %114 = vector.broadcast %cst_53 : f32 to vector<256x128xf32>
    %115 = arith.maximumf %113, %114 : vector<256x128xf32>
    %116 = arith.truncf %115 : vector<256x128xf32> to vector<256x128xbf16>
    %c0_54 = arith.constant 0 : index
    %c0_55 = arith.constant 0 : index
    %117 = vector.load %arg15[%c0_54, %c0_55] : memref<256x128xbf16, #tpu.memory_space<vmem>>, vector<256x128xbf16>
    tpu.vector_store %arg15[%c0_54, %c0_55], %116 {strides = array<i32>} : memref<256x128xbf16, #tpu.memory_space<vmem>>, vector<256x128xbf16>,
    %c0_56 = arith.constant 0 : index
    %c0_57 = arith.constant 0 : index
    %118 = vector.load %arg15[%c0_56, %c0_57] : memref<256x128xbf16, #tpu.memory_space<vmem>>, vector<64x128xbf16>
    %119 = arith.extf %118 : vector<64x128xbf16> to vector<64x128xf32>
    %c64_58 = arith.constant 64 : index
    %c0_59 = arith.constant 0 : index
    %120 = vector.load %arg15[%c64_58, %c0_59] : memref<256x128xbf16, #tpu.memory_space<vmem>>, vector<64x128xbf16>
    %121 = arith.extf %120 : vector<64x128xbf16> to vector<64x128xf32>
    %c128_60 = arith.constant 128 : index
    %c0_61 = arith.constant 0 : index
    %122 = vector.load %arg15[%c128_60, %c0_61] : memref<256x128xbf16, #tpu.memory_space<vmem>>, vector<64x128xbf16>
    %123 = arith.extf %122 : vector<64x128xbf16> to vector<64x128xf32>
    %c192_62 = arith.constant 192 : index
    %c0_63 = arith.constant 0 : index
    %124 = vector.load %arg15[%c192_62, %c0_63] : memref<256x128xbf16, #tpu.memory_space<vmem>>, vector<64x128xbf16>
    %125 = arith.extf %124 : vector<64x128xbf16> to vector<64x128xf32>
    %c1_i32_64 = arith.constant 1 : i32
    %126 = tpu.dynamic_rotate %121 by %c1_i32_64 dim 0 : vector<64x128xf32>, i32 -> vector<64x128xf32>
    %c1_i32_65 = arith.constant 1 : i32
    %127 = tpu.dynamic_rotate %125 by %c1_i32_65 dim 0 : vector<64x128xf32>, i32 -> vector<64x128xf32>
    %c8_i32_66 = arith.constant 8 : i32
    %128 = tpu.dynamic_rotate %123 by %c8_i32_66 dim 0 : vector<64x128xf32>, i32 -> vector<64x128xf32>
    %c8_i32_67 = arith.constant 8 : i32
    %129 = tpu.dynamic_rotate %125 by %c8_i32_67 dim 0 : vector<64x128xf32>, i32 -> vector<64x128xf32>
    %c1_i32_68 = arith.constant 1 : i32
    %130 = tpu.dynamic_rotate %129 by %c1_i32_68 dim 0 : vector<64x128xf32>, i32 -> vector<64x128xf32>
    %131 = vector.broadcast %12 : vector<1x128xf32> to vector<64x128xf32>
    %132 = arith.mulf %119, %131 : vector<64x128xf32>
    %133 = vector.broadcast %13 : vector<1x128xf32> to vector<64x128xf32>
    %134 = arith.mulf %121, %133 : vector<64x128xf32>
    %135 = arith.addf %132, %134 : vector<64x128xf32>
    %136 = vector.broadcast %15 : vector<1x128xf32> to vector<64x128xf32>
    %137 = arith.mulf %123, %136 : vector<64x128xf32>
    %138 = arith.addf %135, %137 : vector<64x128xf32>
    %139 = vector.broadcast %16 : vector<1x128xf32> to vector<64x128xf32>
    %140 = arith.mulf %125, %139 : vector<64x128xf32>
    %141 = arith.addf %138, %140 : vector<64x128xf32>
    %142 = vector.broadcast %11 : vector<1x128xf32> to vector<64x128xf32>
    %143 = arith.mulf %126, %142 : vector<64x128xf32>
    %144 = vector.broadcast %14 : vector<1x128xf32> to vector<64x128xf32>
    %145 = arith.mulf %127, %144 : vector<64x128xf32>
    %146 = arith.addf %143, %145 : vector<64x128xf32>
    %147 = arith.mulf %2, %146 : vector<64x128xf32>
    %148 = arith.addf %141, %147 : vector<64x128xf32>
    %149 = vector.broadcast %9 : vector<1x128xf32> to vector<64x128xf32>
    %150 = arith.mulf %128, %149 : vector<64x128xf32>
    %151 = vector.broadcast %10 : vector<1x128xf32> to vector<64x128xf32>
    %152 = arith.mulf %129, %151 : vector<64x128xf32>
    %153 = arith.addf %150, %152 : vector<64x128xf32>
    %154 = arith.mulf %5, %153 : vector<64x128xf32>
    %155 = arith.addf %148, %154 : vector<64x128xf32>
    %156 = vector.broadcast %8 : vector<1x128xf32> to vector<64x128xf32>
    %157 = arith.mulf %130, %156 : vector<64x128xf32>
    %158 = arith.mulf %6, %157 : vector<64x128xf32>
    %159 = arith.addf %155, %158 : vector<64x128xf32>
    %160 = vector.broadcast %18 : vector<1x128xf32> to vector<64x128xf32>
    %161 = arith.addf %159, %160 : vector<64x128xf32>
    %cst_69 = arith.constant 0.000000e+00 : f32
    %162 = vector.broadcast %cst_69 : f32 to vector<64x128xf32>
    %163 = arith.maximumf %161, %162 : vector<64x128xf32>
    %cst_70 = arith.constant dense<0.000000e+00> : vector<128xf32>
    %164 = vector.multi_reduction <add>, %163, %cst_70 [0] : vector<64x128xf32> to vector<128xf32>
    %165 = vector.shape_cast %164 : vector<128xf32> to vector<1x128xf32>
    %cst_71 = arith.constant 1.562500e-02 : f32
    %166 = vector.broadcast %cst_71 : f32 to vector<1x128xf32>
    %167 = arith.mulf %165, %166 : vector<1x128xf32>
    %168 = arith.truncf %167 : vector<1x128xf32> to vector<1x128xbf16>
    %c0_72 = arith.constant 0 : index
    %c0_73 = arith.constant 0 : index
    %169 = vector.load %arg8[%c0_72, %c0_73] : memref<128x128xbf16, #tpu.memory_space<vmem>>, vector<128x128xbf16>
    %cst_74 = arith.constant dense<0.000000e+00> : vector<1x128xf32>
    %170 = tpu.matmul %168, %169, %cst_74 {dimension_numbers = #tpu.dot_dimension_numbers<[1], [0], [0], [1], [0, 0, 1, 1], [], []>} : vector<1x128xbf16>, vector<128x128xbf16>, vector<1x128xf32> -> vector<1x128xf32>
    %c0_75 = arith.constant 0 : index
    %c0_76 = arith.constant 0 : index
    %171 = vector.load %arg9[%c0_75, %c0_76] : memref<1x128xf32, #tpu.memory_space<vmem>>, vector<1x128xf32>
    %172 = arith.addf %170, %171 : vector<1x128xf32>
    %cst_77 = arith.constant 0.000000e+00 : f32
    %173 = vector.broadcast %cst_77 : f32 to vector<1x128xf32>
    %174 = arith.maximumf %172, %173 : vector<1x128xf32>
    %175 = arith.truncf %174 : vector<1x128xf32> to vector<1x128xbf16>
    %c0_78 = arith.constant 0 : index
    %c0_79 = arith.constant 0 : index
    %176 = vector.load %arg10[%c0_78, %c0_79] : memref<128x128xbf16, #tpu.memory_space<vmem>>, vector<128x128xbf16>
    %cst_80 = arith.constant dense<0.000000e+00> : vector<1x128xf32>
    %177 = tpu.matmul %175, %176, %cst_80 {dimension_numbers = #tpu.dot_dimension_numbers<[1], [0], [0], [1], [0, 0, 1, 1], [], []>} : vector<1x128xbf16>, vector<128x128xbf16>, vector<1x128xf32> -> vector<1x128xf32>
    %c0_81 = arith.constant 0 : index
    %c0_82 = arith.constant 0 : index
    %178 = vector.load %arg11[%c0_81, %c0_82] : memref<1x128xf32, #tpu.memory_space<vmem>>, vector<1x128xf32>
    %179 = arith.addf %177, %178 : vector<1x128xf32>
    %180 = arith.negf %179 : vector<1x128xf32>
    %181 = math.exp %180 : vector<1x128xf32>
    %cst_83 = arith.constant 1.000000e+00 : f32
    %182 = vector.broadcast %cst_83 : f32 to vector<1x128xf32>
    %183 = arith.addf %182, %181 : vector<1x128xf32>
    %184 = arith.divf %182, %183 : vector<1x128xf32>
    %185 = vector.broadcast %184 : vector<1x128xf32> to vector<64x128xf32>
    %186 = arith.mulf %163, %185 : vector<64x128xf32>
    %187 = arith.truncf %186 : vector<64x128xf32> to vector<64x128xbf16>
    %c0_84 = arith.constant 0 : index
    %c0_85 = arith.constant 0 : index
    %188 = vector.load %arg12[%c0_84, %c0_85] : memref<128x128xbf16, #tpu.memory_space<vmem>>, vector<128x128xbf16>
    %cst_86 = arith.constant dense<0.000000e+00> : vector<64x128xf32>
    %189 = tpu.matmul %187, %188, %cst_86 {dimension_numbers = #tpu.dot_dimension_numbers<[1], [0], [0], [1], [0, 0, 1, 1], [], []>} : vector<64x128xbf16>, vector<128x128xbf16>, vector<64x128xf32> -> vector<64x128xf32>
    %190 = vector.broadcast %19 : vector<1x128xf32> to vector<64x128xf32>
    %191 = arith.addf %189, %190 : vector<64x128xf32>
    %192 = arith.truncf %191 : vector<64x128xf32> to vector<64x128xbf16>
    %c1_87 = arith.constant 1 : index
    %c0_88 = arith.constant 0 : index
    %c0_89 = arith.constant 0 : index
    %193 = vector.load %arg14[%c1_87, %c0_88, %c0_89] : memref<2x64x128xbf16, #tpu.memory_space<vmem>>, vector<1x64x128xbf16>
    %194 = vector.shape_cast %193 : vector<1x64x128xbf16> to vector<64x128xbf16>
    %195 = vector.shape_cast %192 : vector<64x128xbf16> to vector<1x64x128xbf16>
    tpu.vector_store %arg14[%c1_87, %c0_88, %c0_89], %195 {strides = array<i32>} : memref<2x64x128xbf16, #tpu.memory_space<vmem>>, vector<1x64x128xbf16>,
    return
  }
  func.func @transform_0(%arg0: i32) -> (i32, i32, i32) {
    %c0_i32 = arith.constant 0 : i32
    %c0_i32_0 = arith.constant 0 : i32
    %c0_i32_1 = arith.constant 0 : i32
    return %arg0, %c0_i32, %c0_i32_0 : i32, i32, i32
  }
  func.func @transform_1(%arg0: i32) -> (i32, i32) {
    %c0_i32 = arith.constant 0 : i32
    %c0_i32_0 = arith.constant 0 : i32
    %c0_i32_1 = arith.constant 0 : i32
    return %c0_i32, %c0_i32_0 : i32, i32
  }
  func.func @transform_2(%arg0: i32) -> (i32, i32) {
    %c0_i32 = arith.constant 0 : i32
    %c0_i32_0 = arith.constant 0 : i32
    %c0_i32_1 = arith.constant 0 : i32
    return %c0_i32, %c0_i32_0 : i32, i32
  }
  func.func @transform_3(%arg0: i32) -> (i32, i32) {
    %c0_i32 = arith.constant 0 : i32
    %c0_i32_0 = arith.constant 0 : i32
    %c0_i32_1 = arith.constant 0 : i32
    return %c0_i32, %c0_i32_0 : i32, i32
  }
  func.func @transform_4(%arg0: i32) -> (i32, i32) {
    %c0_i32 = arith.constant 0 : i32
    %c0_i32_0 = arith.constant 0 : i32
    %c0_i32_1 = arith.constant 0 : i32
    return %c0_i32, %c0_i32_0 : i32, i32
  }
  func.func @transform_5(%arg0: i32) -> (i32, i32) {
    %c0_i32 = arith.constant 0 : i32
    %c0_i32_0 = arith.constant 0 : i32
    %c0_i32_1 = arith.constant 0 : i32
    return %c0_i32, %c0_i32_0 : i32, i32
  }
  func.func @transform_6(%arg0: i32) -> (i32, i32) {
    %c0_i32 = arith.constant 0 : i32
    %c0_i32_0 = arith.constant 0 : i32
    %c0_i32_1 = arith.constant 0 : i32
    return %c0_i32, %c0_i32_0 : i32, i32
  }
  func.func @transform_7(%arg0: i32) -> (i32, i32) {
    %c0_i32 = arith.constant 0 : i32
    %c0_i32_0 = arith.constant 0 : i32
    %c0_i32_1 = arith.constant 0 : i32
    return %c0_i32, %c0_i32_0 : i32, i32
  }
  func.func @transform_8(%arg0: i32) -> (i32, i32) {
    %c0_i32 = arith.constant 0 : i32
    %c0_i32_0 = arith.constant 0 : i32
    %c0_i32_1 = arith.constant 0 : i32
    return %c0_i32, %c0_i32_0 : i32, i32
  }
  func.func @transform_9(%arg0: i32) -> (i32, i32) {
    %c0_i32 = arith.constant 0 : i32
    %c0_i32_0 = arith.constant 0 : i32
    %c0_i32_1 = arith.constant 0 : i32
    return %c0_i32, %c0_i32_0 : i32, i32
  }
  func.func @transform_10(%arg0: i32) -> (i32, i32) {
    %c0_i32 = arith.constant 0 : i32
    %c0_i32_0 = arith.constant 0 : i32
    %c0_i32_1 = arith.constant 0 : i32
    return %c0_i32, %c0_i32_0 : i32, i32
  }
  func.func @transform_11(%arg0: i32) -> (i32, i32) {
    %c0_i32 = arith.constant 0 : i32
    %c0_i32_0 = arith.constant 0 : i32
    %c0_i32_1 = arith.constant 0 : i32
    return %c0_i32, %c0_i32_0 : i32, i32
  }
  func.func @transform_12(%arg0: i32) -> (i32, i32) {
    %c0_i32 = arith.constant 0 : i32
    %c0_i32_0 = arith.constant 0 : i32
    %c0_i32_1 = arith.constant 0 : i32
    return %c0_i32, %c0_i32_0 : i32, i32
  }
  func.func @transform_13(%arg0: i32) -> (i32, i32, i32) {
    %c0_i32 = arith.constant 0 : i32
    %c0_i32_0 = arith.constant 0 : i32
    %c0_i32_1 = arith.constant 0 : i32
    return %arg0, %c0_i32, %c0_i32_0 : i32, i32, i32
  }
}

</mosaic_0001>

<llo_original>
// kernel: tpu_custom_call.1
$region0: #{tpu_custom_call.1}
  #allocation0 [shape = 'u32[]', space=smem, size = 0x4, offset = 0x4, fixed_abs, tag = 'smem constant byte address 0x4 - core index']
  #allocation1 [shape = 'u32[144,128]{1,0:T(1,128)}', space=vmem, size = 0x12000, scoped, tag = 'internal scratch']
  #allocation2 [shape = 'bf16[256,128]{1,0:T(16,128)(2,1)}', space=vmem, size = 0x10000, scoped, tag = 'scratch operand']
  %s0 = inlined_call_operand.hbm [shape: bf16[2,256,128], index: 0, kind: input, shape index: {}]
  %s1 = inlined_call_operand.vmem [shape: f32[64,1], index: 1, kind: input, shape index: {}]
  %s2 = inlined_call_operand.vmem [shape: f32[64,1], index: 2, kind: input, shape index: {}]
  %s3 = inlined_call_operand.vmem [shape: bf16[128,128], index: 3, kind: input, shape index: {}]
  %s4 = inlined_call_operand.hbm [shape: f32[1,128], index: 4, kind: input, shape index: {}]
  %s5 = inlined_call_operand.vmem [shape: f32[9,128], index: 5, kind: input, shape index: {}]
  %s6 = inlined_call_operand.vmem [shape: f32[1,128], index: 6, kind: input, shape index: {}]
  %s7 = inlined_call_operand.vmem [shape: bf16[128,128], index: 7, kind: input, shape index: {}]
  %s8 = inlined_call_operand.vmem [shape: f32[1,128], index: 8, kind: input, shape index: {}]
  %s9 = inlined_call_operand.hbm [shape: bf16[128,128], index: 9, kind: input, shape index: {}]
  %s10 = inlined_call_operand.vmem [shape: f32[1,128], index: 10, kind: input, shape index: {}]
  %s11 = inlined_call_operand.hbm [shape: bf16[128,128], index: 11, kind: input, shape index: {}]
  %s12 = inlined_call_operand.vmem [shape: f32[1,128], index: 12, kind: input, shape index: {}]
  %s13 = inlined_call_operand.hbm [shape: bf16[2,64,128], index: 13, kind: output, shape index: {}]
  %s14 = sld [smem:[#allocation0]]
  $region78: #{tpu_custom_call.1} parent=0
    _
  %s16 = ssub.s32 1, %s14
  %s17 = scalar_select 0, %s16, %s14
  $region1: #{tpu_custom_call.1} parent=0
    #allocation3 [shape = 'u8[131072]{0}', space=vmem, size = 0x20000, scoped, tag = 'input window, operand 0, single buffered']
    #allocation4 [shape = 's32[1]{0}', space=sflag, size = 0x4, scoped, tag = 'scoped memory for tpu_custom_call.1']
    #allocation5 [shape = 's32[1]{0}', space=sflag, size = 0x4, scoped, tag = 'scoped memory for tpu_custom_call.1']
    #allocation6 [shape = 'u8[512]{0}', space=vmem, size = 0x400, scoped, tag = 'input window, operand 4, single buffered']
    #allocation7 [shape = 's32[1]{0}', space=sflag, size = 0x4, scoped, tag = 'scoped memory for tpu_custom_call.1']
    #allocation8 [shape = 'u8[32768]{0}', space=vmem, size = 0x8000, scoped, tag = 'input window, operand 9, single buffered']
    #allocation9 [shape = 'u8[32768]{0}', space=vmem, size = 0x8000, scoped, tag = 'input window, operand 11, single buffered']
    #allocation10 [shape = 's32[1]{0}', space=sflag, size = 0x4, scoped, tag = 'scoped memory for tpu_custom_call.1']
    #allocation11 [shape = 'u8[32768]{0}', space=vmem, size = 0x8000, scoped, tag = 'output window, operand 0, single buffered']
    %18 = vsyncpa [#allocation4], 0
    %19 = vsyncpa [#allocation7], 0
    %20 = vsyncpa [#allocation10], 0
    %21 = vsyncpa [#allocation5], 0
    // Predicated region
    $region2: #{tpu_custom_call.1} parent=1 // pred_check
      _
    $region3: #{tpu_custom_call.1} parent=1 // pred_check_branch
      %23 = sbr.rel (0) target = $region5
    $region4: #{tpu_custom_call.1} parent=1 // pred_region
      %s25 = ssub.s32 4096, 4096
      %26 = vsyncadd [#allocation4], %s25
      %s27 = sshll.u32 [#allocation3], 4
      %s28 = int_to_ptr.vmem [resolvable:$true] %s27
      %33 = dma.hbm_to_vmem [thread:$0]  %s0, 4096, %s28, [#allocation4], 64, 64, 4
    $region5: #{tpu_custom_call.1} parent=1 // pred_fallthru
      _
    // Predicated region
    $region6: #{tpu_custom_call.1} parent=1 // pred_check
      _
    $region7: #{tpu_custom_call.1} parent=1 // pred_check_branch
      %35 = sbr.rel (0) target = $region9
    $region8: #{tpu_custom_call.1} parent=1 // pred_region
      _
    $region9: #{tpu_custom_call.1} parent=1 // pred_fallthru
      _
    // Predicated region
    $region10: #{tpu_custom_call.1} parent=1 // pred_check
      _
    $region11: #{tpu_custom_call.1} parent=1 // pred_check_branch
      %37 = sbr.rel (0) target = $region13
    $region12: #{tpu_custom_call.1} parent=1 // pred_region
      _
    $region13: #{tpu_custom_call.1} parent=1 // pred_fallthru
      _
    // Predicated region
    $region14: #{tpu_custom_call.1} parent=1 // pred_check
      _
    $region15: #{tpu_custom_call.1} parent=1 // pred_check_branch
      %39 = sbr.rel (0) target = $region17
    $region16: #{tpu_custom_call.1} parent=1 // pred_region
      _
    $region17: #{tpu_custom_call.1} parent=1 // pred_fallthru
      _
    // Predicated region
    $region18: #{tpu_custom_call.1} parent=1 // pred_check
      _
    $region19: #{tpu_custom_call.1} parent=1 // pred_check_branch
      %41 = sbr.rel (0) target = $region21
    $region20: #{tpu_custom_call.1} parent=1 // pred_region
      %s43 = ssub.s32 16, 16
      %44 = vsyncadd [#allocation7], %s43
      %s46 = sshll.u32 [#allocation6], 4
      %s47 = int_to_ptr.vmem [resolvable:$true] %s46
      %49 = dma.hbm_to_vmem [thread:$0]  %s4, 16, %s47, [#allocation7]
    $region21: #{tpu_custom_call.1} parent=1 // pred_fallthru
      _
    // Predicated region
    $region22: #{tpu_custom_call.1} parent=1 // pred_check
      _
    $region23: #{tpu_custom_call.1} parent=1 // pred_check_branch
      %51 = sbr.rel (0) target = $region25
    $region24: #{tpu_custom_call.1} parent=1 // pred_region
      _
    $region25: #{tpu_custom_call.1} parent=1 // pred_fallthru
      _
    // Predicated region
    $region26: #{tpu_custom_call.1} parent=1 // pred_check
      _
    $region27: #{tpu_custom_call.1} parent=1 // pred_check_branch
      %53 = sbr.rel (0) target = $region29
    $region28: #{tpu_custom_call.1} parent=1 // pred_region
      _
    $region29: #{tpu_custom_call.1} parent=1 // pred_fallthru
      _
    // Predicated region
    $region30: #{tpu_custom_call.1} parent=1 // pred_check
      _
    $region31: #{tpu_custom_call.1} parent=1 // pred_check_branch
      %55 = sbr.rel (0) target = $region33
    $region32: #{tpu_custom_call.1} parent=1 // pred_region
      _
    $region33: #{tpu_custom_call.1} parent=1 // pred_fallthru
      _
    // Predicated region
    $region34: #{tpu_custom_call.1} parent=1 // pred_check
      _
    $region35: #{tpu_custom_call.1} parent=1 // pred_check_branch
      %57 = sbr.rel (0) target = $region37
    $region36: #{tpu_custom_call.1} parent=1 // pred_region
      _
    $region37: #{tpu_custom_call.1} parent=1 // pred_fallthru
      _
    // Predicated region
    $region38: #{tpu_custom_call.1} parent=1 // pred_check
      _
    $region39: #{tpu_custom_call.1} parent=1 // pred_check_branch
      %59 = sbr.rel (0) target = $region41
    $region40: #{tpu_custom_call.1} parent=1 // pred_region
      %s61 = ssub.s32 1024, 1024
      %62 = vsyncadd [#allocation7], %s61
      %s63 = sshll.u32 [#allocation8], 4
      %s64 = int_to_ptr.vmem [resolvable:$true] %s63
      %69 = dma.hbm_to_vmem [thread:$0]  %s9, 1024, %s64, [#allocation7], 64, 64, 4
    $region41: #{tpu_custom_call.1} parent=1 // pred_fallthru
      _
    // Predicated region
    $region42: #{tpu_custom_call.1} parent=1 // pred_check
      _
    $region43: #{tpu_custom_call.1} parent=1 // pred_check_branch
      %71 = sbr.rel (0) target = $region45
    $region44: #{tpu_custom_call.1} parent=1 // pred_region
      _
    $region45: #{tpu_custom_call.1} parent=1 // pred_fallthru
      _
    // Predicated region
    $region46: #{tpu_custom_call.1} parent=1 // pred_check
      _
    $region47: #{tpu_custom_call.1} parent=1 // pred_check_branch
      %73 = sbr.rel (0) target = $region49
    $region48: #{tpu_custom_call.1} parent=1 // pred_region
      %s75 = ssub.s32 1024, 1024
      %76 = vsyncadd [#allocation10], %s75
      %s77 = sshll.u32 [#allocation9], 4
      %s78 = int_to_ptr.vmem [resolvable:$true] %s77
      %83 = dma.hbm_to_vmem [thread:$0]  %s11, 1024, %s78, [#allocation10], 64, 64, 4
    $region49: #{tpu_custom_call.1} parent=1 // pred_fallthru
      _
    // Predicated region
    $region50: #{tpu_custom_call.1} parent=1 // pred_check
      _
    $region51: #{tpu_custom_call.1} parent=1 // pred_check_branch
      %85 = sbr.rel (0) target = $region53
    $region52: #{tpu_custom_call.1} parent=1 // pred_region
      _
    $region53: #{tpu_custom_call.1} parent=1 // pred_fallthru
      _
    // Predicated region
    $region54: #{tpu_custom_call.1} parent=1 // pred_check
      _
    $region55: #{tpu_custom_call.1} parent=1 // pred_check_branch
      %87 = sbr.rel (0) target = $region57
    $region56: #{tpu_custom_call.1} parent=1 // pred_region
      %88 = dma.done [#allocation4], 4096
    $region57: #{tpu_custom_call.1} parent=1 // pred_fallthru
      _
    // Predicated region
    $region58: #{tpu_custom_call.1} parent=1 // pred_check
      _
    $region59: #{tpu_custom_call.1} parent=1 // pred_check_branch
      %90 = sbr.rel (0) target = $region61
    $region60: #{tpu_custom_call.1} parent=1 // pred_region
      %91 = dma.done [#allocation7], 16
    $region61: #{tpu_custom_call.1} parent=1 // pred_fallthru
      _
    // Predicated region
    $region62: #{tpu_custom_call.1} parent=1 // pred_check
      _
    $region63: #{tpu_custom_call.1} parent=1 // pred_check_branch
      %93 = sbr.rel (0) target = $region65
    $region64: #{tpu_custom_call.1} parent=1 // pred_region
      %94 = dma.done [#allocation7], 1024
    $region65: #{tpu_custom_call.1} parent=1 // pred_fallthru
      _
    // Predicated region
    $region66: #{tpu_custom_call.1} parent=1 // pred_check
      _
    $region67: #{tpu_custom_call.1} parent=1 // pred_check_branch
      %96 = sbr.rel (0) target = $region69
    $region68: #{tpu_custom_call.1} parent=1 // pred_region
      %97 = dma.done [#allocation10], 1024
    $region69: #{tpu_custom_call.1} parent=1 // pred_fallthru
      _
    %v99 = vld [vmem:[%s1] sm:$0xff]
    %v100 = vld [vmem:[%s1 + $0x8] sm:$0xff]
    %v101 = vld [vmem:[%s1 + $0x10] sm:$0xff]
    %v102 = vld [vmem:[%s1 + $0x18] sm:$0xff]
    %v103 = vld [vmem:[%s1 + $0x20] sm:$0xff]
    %v104 = vld [vmem:[%s1 + $0x28] sm:$0xff]
    %v105 = vld [vmem:[%s1 + $0x30] sm:$0xff]
    %v106 = vld [vmem:[%s1 + $0x38] sm:$0xff]
    %108 = vset.pattern.permute.xlu0 0
    %109 = vperm.xlu0 %108, %v99
    %v110 = vpop.permute.xlu0 %109
    %113 = vset.pattern.permute.xlu0 0
    %114 = vperm.xlu0 %113, %v100
    %v115 = vpop.permute.xlu0 %114
    %118 = vset.pattern.permute.xlu0 0
    %119 = vperm.xlu0 %118, %v101
    %v120 = vpop.permute.xlu0 %119
    %123 = vset.pattern.permute.xlu0 0
    %124 = vperm.xlu0 %123, %v102
    %v125 = vpop.permute.xlu0 %124
    %128 = vset.pattern.permute.xlu0 0
    %129 = vperm.xlu0 %128, %v103
    %v130 = vpop.permute.xlu0 %129
    %133 = vset.pattern.permute.xlu0 0
    %134 = vperm.xlu0 %133, %v104
    %v135 = vpop.permute.xlu0 %134
    %138 = vset.pattern.permute.xlu0 0
    %139 = vperm.xlu0 %138, %v105
    %v140 = vpop.permute.xlu0 %139
    %143 = vset.pattern.permute.xlu0 0
    %144 = vperm.xlu0 %143, %v106
    %v145 = vpop.permute.xlu0 %144
    %v147 = vld [vmem:[%s2] sm:$0xff]
    %v148 = vld [vmem:[%s2 + $0x8] sm:$0xff]
    %v149 = vld [vmem:[%s2 + $0x10] sm:$0xff]
    %v150 = vld [vmem:[%s2 + $0x18] sm:$0xff]
    %v151 = vld [vmem:[%s2 + $0x20] sm:$0xff]
    %v152 = vld [vmem:[%s2 + $0x28] sm:$0xff]
    %v153 = vld [vmem:[%s2 + $0x30] sm:$0xff]
    %v154 = vld [vmem:[%s2 + $0x38] sm:$0xff]
    %156 = vset.pattern.permute.xlu0 0
    %157 = vperm.xlu0 %156, %v147
    %v158 = vpop.permute.xlu0 %157
    %161 = vset.pattern.permute.xlu0 0
    %162 = vperm.xlu0 %161, %v148
    %v163 = vpop.permute.xlu0 %162
    %166 = vset.pattern.permute.xlu0 0
    %167 = vperm.xlu0 %166, %v149
    %v168 = vpop.permute.xlu0 %167
    %171 = vset.pattern.permute.xlu0 0
    %172 = vperm.xlu0 %171, %v150
    %v173 = vpop.permute.xlu0 %172
    %176 = vset.pattern.permute.xlu0 0
    %177 = vperm.xlu0 %176, %v151
    %v178 = vpop.permute.xlu0 %177
    %181 = vset.pattern.permute.xlu0 0
    %182 = vperm.xlu0 %181, %v152
    %v183 = vpop.permute.xlu0 %182
    %186 = vset.pattern.permute.xlu0 0
    %187 = vperm.xlu0 %186, %v153
    %v188 = vpop.permute.xlu0 %187
    %191 = vset.pattern.permute.xlu0 0
    %192 = vperm.xlu0 %191, %v154
    %v193 = vpop.permute.xlu0 %192
    %v195 = vmul.f32 %v110, %v158
    %v196 = vmul.f32 %v115, %v163
    %v197 = vmul.f32 %v120, %v168
    %v198 = vmul.f32 %v125, %v173
    %v199 = vmul.f32 %v130, %v178
    %v200 = vmul.f32 %v135, %v183
    %v201 = vmul.f32 %v140, %v188
    %v202 = vmul.f32 %v145, %v193
    %v203 = vld [vmem:[%s5] sm:$0xff]
    %v204 = vld [vmem:[%s5 + $0x8] sm:$0x1]
    %v205 = vld [vmem:[#allocation6] sm:$0x1]
    %v206 = vld [vmem:[%s6] sm:$0x1]
    %v207 = vld [vmem:[%s12] sm:$0x1]
    %v208 = vld [vmem:[#allocation3] sm:$0xf]
    %v209 = vld [vmem:[#allocation3 + $0x4] sm:$0xf]
    %v210 = vld [vmem:[#allocation3 + $0x8] sm:$0xf]
    %v211 = vld [vmem:[#allocation3 + $0xc] sm:$0xf]
    %v212 = vld [vmem:[#allocation3 + $0x10] sm:$0xf]
    %v213 = vld [vmem:[#allocation3 + $0x14] sm:$0xf]
    %v214 = vld [vmem:[#allocation3 + $0x18] sm:$0xf]
    %v215 = vld [vmem:[#allocation3 + $0x1c] sm:$0xf]
    %v216 = vld [vmem:[#allocation3 + $0x20] sm:$0xf]
    %v217 = vld [vmem:[#allocation3 + $0x24] sm:$0xf]
    %v218 = vld [vmem:[#allocation3 + $0x28] sm:$0xf]
    %v219 = vld [vmem:[#allocation3 + $0x2c] sm:$0xf]
    %v220 = vld [vmem:[#allocation3 + $0x30] sm:$0xf]
    %v221 = vld [vmem:[#allocation3 + $0x34] sm:$0xf]
    %v222 = vld [vmem:[#allocation3 + $0x38] sm:$0xf]
    %v223 = vld [vmem:[#allocation3 + $0x3c] sm:$0xf]
    %v224 = vld [vmem:[#allocation3 + $0x40] sm:$0xf]
    %v225 = vld [vmem:[#allocation3 + $0x44] sm:$0xf]
    %v226 = vld [vmem:[#allocation3 + $0x48] sm:$0xf]
    %v227 = vld [vmem:[#allocation3 + $0x4c] sm:$0xf]
    %v228 = vld [vmem:[#allocation3 + $0x50] sm:$0xf]
    %v229 = vld [vmem:[#allocation3 + $0x54] sm:$0xf]
    %v230 = vld [vmem:[#allocation3 + $0x58] sm:$0xf]
    %v231 = vld [vmem:[#allocation3 + $0x5c] sm:$0xf]
    %v232 = vld [vmem:[#allocation3 + $0x60] sm:$0xf]
    %v233 = vld [vmem:[#allocation3 + $0x64] sm:$0xf]
    %v234 = vld [vmem:[#allocation3 + $0x68] sm:$0xf]
    %v235 = vld [vmem:[#allocation3 + $0x6c] sm:$0xf]
    %v236 = vld [vmem:[#allocation3 + $0x70] sm:$0xf]
    %v237 = vld [vmem:[#allocation3 + $0x74] sm:$0xf]
    %v238 = vld [vmem:[#allocation3 + $0x78] sm:$0xf]
    %v239 = vld [vmem:[#allocation3 + $0x7c] sm:$0xf]
    %v240 = vld [vmem:[%s3] sm:$0xf]
    %v241 = vld [vmem:[%s3 + $0x4] sm:$0xf]
    %v242 = vld [vmem:[%s3 + $0x8] sm:$0xf]
    %v243 = vld [vmem:[%s3 + $0xc] sm:$0xf]
    %v244 = vld [vmem:[%s3 + $0x10] sm:$0xf]
    %v245 = vld [vmem:[%s3 + $0x14] sm:$0xf]
    %v246 = vld [vmem:[%s3 + $0x18] sm:$0xf]
    %v247 = vld [vmem:[%s3 + $0x1c] sm:$0xf]
    %v248 = vld [vmem:[%s3 + $0x20] sm:$0xf]
    %v249 = vld [vmem:[%s3 + $0x24] sm:$0xf]
    %v250 = vld [vmem:[%s3 + $0x28] sm:$0xf]
    %v251 = vld [vmem:[%s3 + $0x2c] sm:$0xf]
    %v252 = vld [vmem:[%s3 + $0x30] sm:$0xf]
    %v253 = vld [vmem:[%s3 + $0x34] sm:$0xf]
    %v254 = vld [vmem:[%s3 + $0x38] sm:$0xf]
    %v255 = vld [vmem:[%s3 + $0x3c] sm:$0xf]
    %v257 = vlaneseq
    %v258 = vshrl.u32 %v257, 7
    %v259 = vsub.s32 0, %v258
    %v260 = vrot.slane %v205, %v259
    %v294 = vunpack.c.l.b16 %v208
    %v295 = vunpack.c.l.b16 %v209
    %v296 = vunpack.c.l.b16 %v210
    %v297 = vunpack.c.l.b16 %v211
    %v298 = vunpack.c.l.b16 %v212
    %v299 = vunpack.c.l.b16 %v213
    %v300 = vunpack.c.l.b16 %v214
    %v301 = vunpack.c.l.b16 %v215
    %v302 = vunpack.c.l.b16 %v216
    %v303 = vunpack.c.l.b16 %v217
    %v304 = vunpack.c.l.b16 %v218
    %v305 = vunpack.c.l.b16 %v219
    %v306 = vunpack.c.l.b16 %v220
    %v307 = vunpack.c.l.b16 %v221
    %v308 = vunpack.c.l.b16 %v222
    %v309 = vunpack.c.l.b16 %v223
    %v310 = vunpack.c.l.b16 %v224
    %v311 = vunpack.c.l.b16 %v225
    %v312 = vunpack.c.l.b16 %v226
    %v313 = vunpack.c.l.b16 %v227
    %v314 = vunpack.c.l.b16 %v228
    %v315 = vunpack.c.l.b16 %v229
    %v316 = vunpack.c.l.b16 %v230
    %v317 = vunpack.c.l.b16 %v231
    %v318 = vunpack.c.l.b16 %v232
    %v319 = vunpack.c.l.b16 %v233
    %v320 = vunpack.c.l.b16 %v234
    %v321 = vunpack.c.l.b16 %v235
    %v322 = vunpack.c.l.b16 %v236
    %v323 = vunpack.c.l.b16 %v237
    %v324 = vunpack.c.l.b16 %v238
    %v325 = vunpack.c.l.b16 %v239
    %v326 = vpack.c.b16 %v295, %v294
    %v327 = vpack.c.b16 %v297, %v296
    %v328 = vpack.c.b16 %v299, %v298
    %v329 = vpack.c.b16 %v301, %v300
    %v330 = vpack.c.b16 %v303, %v302
    %v331 = vpack.c.b16 %v305, %v304
    %v332 = vpack.c.b16 %v307, %v306
    %v333 = vpack.c.b16 %v309, %v308
    %v334 = vpack.c.b16 %v311, %v310
    %v335 = vpack.c.b16 %v313, %v312
    %v336 = vpack.c.b16 %v315, %v314
    %v337 = vpack.c.b16 %v317, %v316
    %v338 = vpack.c.b16 %v319, %v318
    %v339 = vpack.c.b16 %v321, %v320
    %v340 = vpack.c.b16 %v323, %v322
    %v341 = vpack.c.b16 %v325, %v324
    %v374 = vunpack.c.l.b16 %v240
    %v375 = vunpack.c.l.b16 %v241
    %v376 = vunpack.c.l.b16 %v242
    %v377 = vunpack.c.l.b16 %v243
    %v378 = vunpack.c.l.b16 %v244
    %v379 = vunpack.c.l.b16 %v245
    %v380 = vunpack.c.l.b16 %v246
    %v381 = vunpack.c.l.b16 %v247
    %v382 = vunpack.c.l.b16 %v248
    %v383 = vunpack.c.l.b16 %v249
    %v384 = vunpack.c.l.b16 %v250
    %v385 = vunpack.c.l.b16 %v251
    %v386 = vunpack.c.l.b16 %v252
    %v387 = vunpack.c.l.b16 %v253
    %v388 = vunpack.c.l.b16 %v254
    %v389 = vunpack.c.l.b16 %v255
    %v390 = vpack.c.b16 %v375, %v374
    %v391 = vpack.c.b16 %v377, %v376
    %v392 = vpack.c.b16 %v379, %v378
    %v393 = vpack.c.b16 %v381, %v380
    %v394 = vpack.c.b16 %v383, %v382
    %v395 = vpack.c.b16 %v385, %v384
    %v396 = vpack.c.b16 %v387, %v386
    %v397 = vpack.c.b16 %v389, %v388
    %406 = vmatprep.subr.bf16.mxu0 0
    %407 = vmatpush1.bf16.msra.mxu0 %v390
    %408 = vmatprep.subr.bf16.mxu0 0
    %409 = vmatpush1.bf16.msra.mxu0 %v391
    %410 = vmatprep.subr.bf16.mxu0 0
    %411 = vmatpush1.bf16.msra.mxu0 %v392
    %412 = vmatprep.subr.bf16.mxu0 0
    %413 = vmatpush1.bf16.msra.mxu0 %v393
    %414 = vmatprep.subr.bf16.mxu0 0
    %415 = vmatpush1.bf16.msra.mxu0 %v394
    %416 = vmatprep.subr.bf16.mxu0 0
    %417 = vmatpush1.bf16.msra.mxu0 %v395
    %418 = vmatprep.subr.bf16.mxu0 0
    %419 = vmatpush1.bf16.msra.mxu0 %v396
    %420 = vmatprep.subr.bf16.mxu0 0
    %421 = vmatpush1.bf16.msra.mxu0 %v397
    %422 = vmatprep.subr.bf16.mxu0 0
    %423 = vmatpush1.bf16.msra.mxu0 0
    %424 = vmatprep.subr.bf16.mxu0 0
    %425 = vmatpush1.bf16.msra.mxu0 0
    %426 = vmatprep.subr.bf16.mxu0 0
    %427 = vmatpush1.bf16.msra.mxu0 0
    %428 = vmatprep.subr.bf16.mxu0 0
    %429 = vmatpush1.bf16.msra.mxu0 0
    %430 = vmatprep.subr.bf16.mxu0 0
    %431 = vmatpush1.bf16.msra.mxu0 0
    %432 = vmatprep.subr.bf16.mxu0 0
    %433 = vmatpush1.bf16.msra.mxu0 0
    %434 = vmatprep.subr.bf16.mxu0 0
    %435 = vmatpush1.bf16.msra.mxu0 0
    %436 = vmatprep.subr.bf16.mxu0 0
    %437 = vmatpush1.bf16.msra.mxu0 0
    %438 = vmatprep.mubr.bf16.mxu0 0
    %439 = vmatmul.mubr.bf16.gmra.mrb[0].mxu0 %v326
    %v440 = vpop.f32.mrb[0].mxu0
    %v441 = vadd.f32 %v260, %v440
    %v442 = vpop.f32.mrb[0].mxu0
    %v443 = vpop.f32.mrb[0].mxu0
    %v444 = vadd.f32 %v260, %v443
    %v445 = vpop.f32.mrb[0].mxu0
    %446 = vmatprep.mubr.bf16.mxu0 0
    %447 = vmatmul.mubr.bf16.gmra.mrb[0].mxu0 %v327
    %v448 = vpop.f32.mrb[0].mxu0
    %v449 = vadd.f32 %v260, %v448
    %v450 = vpop.f32.mrb[0].mxu0
    %v451 = vpop.f32.mrb[0].mxu0
    %v452 = vadd.f32 %v260, %v451
    %v453 = vpop.f32.mrb[0].mxu0
    %454 = vmatprep.mubr.bf16.mxu0 0
    %455 = vmatmul.mubr.bf16.gmra.mrb[0].mxu0 %v328
    %v456 = vpop.f32.mrb[0].mxu0
    %v457 = vadd.f32 %v260, %v456
    %v458 = vpop.f32.mrb[0].mxu0
    %v459 = vpop.f32.mrb[0].mxu0
    %v460 = vadd.f32 %v260, %v459
    %v461 = vpop.f32.mrb[0].mxu0
    %462 = vmatprep.mubr.bf16.mxu0 0
    %463 = vmatmul.mubr.bf16.gmra.mrb[0].mxu0 %v329
    %v464 = vpop.f32.mrb[0].mxu0
    %v465 = vadd.f32 %v260, %v464
    %v466 = vpop.f32.mrb[0].mxu0
    %v467 = vpop.f32.mrb[0].mxu0
    %v468 = vadd.f32 %v260, %v467
    %v469 = vpop.f32.mrb[0].mxu0
    %470 = vmatprep.mubr.bf16.mxu0 0
    %471 = vmatmul.mubr.bf16.gmra.mrb[0].mxu0 %v330
    %v472 = vpop.f32.mrb[0].mxu0
    %v473 = vadd.f32 %v260, %v472
    %v474 = vpop.f32.mrb[0].mxu0
    %v475 = vpop.f32.mrb[0].mxu0
    %v476 = vadd.f32 %v260, %v475
    %v477 = vpop.f32.mrb[0].mxu0
    %478 = vmatprep.mubr.bf16.mxu0 0
    %479 = vmatmul.mubr.bf16.gmra.mrb[0].mxu0 %v331
    %v480 = vpop.f32.mrb[0].mxu0
    %v481 = vadd.f32 %v260, %v480
    %v482 = vpop.f32.mrb[0].mxu0
    %v483 = vpop.f32.mrb[0].mxu0
    %v484 = vadd.f32 %v260, %v483
    %v485 = vpop.f32.mrb[0].mxu0
    %486 = vmatprep.mubr.bf16.mxu0 0
    %487 = vmatmul.mubr.bf16.gmra.mrb[0].mxu0 %v332
    %v488 = vpop.f32.mrb[0].mxu0
    %v489 = vadd.f32 %v260, %v488
    %v490 = vpop.f32.mrb[0].mxu0
    %v491 = vpop.f32.mrb[0].mxu0
    %v492 = vadd.f32 %v260, %v491
    %v493 = vpop.f32.mrb[0].mxu0
    %494 = vmatprep.mubr.bf16.mxu0 0
    %495 = vmatmul.mubr.bf16.gmra.mrb[0].mxu0 %v333
    %v496 = vpop.f32.mrb[0].mxu0
    %v497 = vadd.f32 %v260, %v496
    %v498 = vpop.f32.mrb[0].mxu0
    %v499 = vpop.f32.mrb[0].mxu0
    %v500 = vadd.f32 %v260, %v499
    %v501 = vpop.f32.mrb[0].mxu0
    %502 = vmatprep.mubr.bf16.mxu0 0
    %503 = vmatmul.mubr.bf16.gmra.mrb[0].mxu0 %v334
    %v504 = vpop.f32.mrb[0].mxu0
    %v505 = vadd.f32 %v260, %v504
    %v506 = vpop.f32.mrb[0].mxu0
    %v507 = vpop.f32.mrb[0].mxu0
    %v508 = vadd.f32 %v260, %v507
    %v509 = vpop.f32.mrb[0].mxu0
    %510 = vmatprep.mubr.bf16.mxu0 0
    %511 = vmatmul.mubr.bf16.gmra.mrb[0].mxu0 %v335
    %v512 = vpop.f32.mrb[0].mxu0
    %v513 = vadd.f32 %v260, %v512
    %v514 = vpop.f32.mrb[0].mxu0
    %v515 = vpop.f32.mrb[0].mxu0
    %v516 = vadd.f32 %v260, %v515
    %v517 = vpop.f32.mrb[0].mxu0
    %518 = vmatprep.mubr.bf16.mxu0 0
    %519 = vmatmul.mubr.bf16.gmra.mrb[0].mxu0 %v336
    %v520 = vpop.f32.mrb[0].mxu0
    %v521 = vadd.f32 %v260, %v520
    %v522 = vpop.f32.mrb[0].mxu0
    %v523 = vpop.f32.mrb[0].mxu0
    %v524 = vadd.f32 %v260, %v523
    %v525 = vpop.f32.mrb[0].mxu0
    %526 = vmatprep.mubr.bf16.mxu0 0
    %527 = vmatmul.mubr.bf16.gmra.mrb[0].mxu0 %v337
    %v528 = vpop.f32.mrb[0].mxu0
    %v529 = vadd.f32 %v260, %v528
    %v530 = vpop.f32.mrb[0].mxu0
    %v531 = vpop.f32.mrb[0].mxu0
    %v532 = vadd.f32 %v260, %v531
    %v533 = vpop.f32.mrb[0].mxu0
    %534 = vmatprep.mubr.bf16.mxu0 0
    %535 = vmatmul.mubr.bf16.gmra.mrb[0].mxu0 %v338
    %v536 = vpop.f32.mrb[0].mxu0
    %v537 = vadd.f32 %v260, %v536
    %v538 = vpop.f32.mrb[0].mxu0
    %v539 = vpop.f32.mrb[0].mxu0
    %v540 = vadd.f32 %v260, %v539
    %v541 = vpop.f32.mrb[0].mxu0
    %542 = vmatprep.mubr.bf16.mxu0 0
    %543 = vmatmul.mubr.bf16.gmra.mrb[0].mxu0 %v339
    %v544 = vpop.f32.mrb[0].mxu0
    %v545 = vadd.f32 %v260, %v544
    %v546 = vpop.f32.mrb[0].mxu0
    %v547 = vpop.f32.mrb[0].mxu0
    %v548 = vadd.f32 %v260, %v547
    %v549 = vpop.f32.mrb[0].mxu0
    %550 = vmatprep.mubr.bf16.mxu0 0
    %551 = vmatmul.mubr.bf16.gmra.mrb[0].mxu0 %v340
    %v552 = vpop.f32.mrb[0].mxu0
    %v553 = vadd.f32 %v260, %v552
    %v554 = vpop.f32.mrb[0].mxu0
    %v555 = vpop.f32.mrb[0].mxu0
    %v556 = vadd.f32 %v260, %v555
    %v557 = vpop.f32.mrb[0].mxu0
    %558 = vmatprep.mubr.bf16.mxu0 0
    %559 = vmatmul.mubr.bf16.gmra.mrb[0].mxu0 %v341
    %v560 = vpop.f32.mrb[0].mxu0
    %v561 = vadd.f32 %v260, %v560
    %v562 = vpop.f32.mrb[0].mxu0
    %v563 = vpop.f32.mrb[0].mxu0
    %v564 = vadd.f32 %v260, %v563
    %v565 = vpop.f32.mrb[0].mxu0
    %566 = vdwg.mxu0
    %v567 = vmax.f32 %v441, 0.0
    %v568 = vmax.f32 %v444, 0.0
    %v569 = vmax.f32 %v449, 0.0
    %v570 = vmax.f32 %v452, 0.0
    %v571 = vmax.f32 %v457, 0.0
    %v572 = vmax.f32 %v460, 0.0
    %v573 = vmax.f32 %v465, 0.0
    %v574 = vmax.f32 %v468, 0.0
    %v575 = vmax.f32 %v473, 0.0
    %v576 = vmax.f32 %v476, 0.0
    %v577 = vmax.f32 %v481, 0.0
    %v578 = vmax.f32 %v484, 0.0
    %v579 = vmax.f32 %v489, 0.0
    %v580 = vmax.f32 %v492, 0.0
    %v581 = vmax.f32 %v497, 0.0
    %v582 = vmax.f32 %v500, 0.0
    %v583 = vmax.f32 %v505, 0.0
    %v584 = vmax.f32 %v508, 0.0
    %v585 = vmax.f32 %v513, 0.0
    %v586 = vmax.f32 %v516, 0.0
    %v587 = vmax.f32 %v521, 0.0
    %v588 = vmax.f32 %v524, 0.0
    %v589 = vmax.f32 %v529, 0.0
    %v590 = vmax.f32 %v532, 0.0
    %v591 = vmax.f32 %v537, 0.0
    %v592 = vmax.f32 %v540, 0.0
    %v593 = vmax.f32 %v545, 0.0
    %v594 = vmax.f32 %v548, 0.0
    %v595 = vmax.f32 %v553, 0.0
    %v596 = vmax.f32 %v556, 0.0
    %v597 = vmax.f32 %v561, 0.0
    %v598 = vmax.f32 %v564, 0.0
    %v599 = vpack.c.bf16 %v568, %v567
    %v600 = vpack.c.bf16 %v570, %v569
    %v601 = vpack.c.bf16 %v572, %v571
    %v602 = vpack.c.bf16 %v574, %v573
    %v603 = vpack.c.bf16 %v576, %v575
    %v604 = vpack.c.bf16 %v578, %v577
    %v605 = vpack.c.bf16 %v580, %v579
    %v606 = vpack.c.bf16 %v582, %v581
    %v607 = vpack.c.bf16 %v584, %v583
    %v608 = vpack.c.bf16 %v586, %v585
    %v609 = vpack.c.bf16 %v588, %v587
    %v610 = vpack.c.bf16 %v590, %v589
    %v611 = vpack.c.bf16 %v592, %v591
    %v612 = vpack.c.bf16 %v594, %v593
    %v613 = vpack.c.bf16 %v596, %v595
    %v614 = vpack.c.bf16 %v598, %v597
    %615 = vst [vmem:[#allocation2] sm:$0xff] %v599
    %616 = vst [vmem:[#allocation2 + $0x8] sm:$0xff] %v600
    %617 = vst [vmem:[#allocation2 + $0x10] sm:$0xff] %v601
    %618 = vst [vmem:[#allocation2 + $0x18] sm:$0xff] %v602
    %619 = vst [vmem:[#allocation2 + $0x20] sm:$0xff] %v603
    %620 = vst [vmem:[#allocation2 + $0x28] sm:$0xff] %v604
    %621 = vst [vmem:[#allocation2 + $0x30] sm:$0xff] %v605
    %622 = vst [vmem:[#allocation2 + $0x38] sm:$0xff] %v606
    %623 = vst [vmem:[#allocation2 + $0x40] sm:$0xff] %v607
    %624 = vst [vmem:[#allocation2 + $0x48] sm:$0xff] %v608
    %625 = vst [vmem:[#allocation2 + $0x50] sm:$0xff] %v609
    %626 = vst [vmem:[#allocation2 + $0x58] sm:$0xff] %v610
    %627 = vst [vmem:[#allocation2 + $0x60] sm:$0xff] %v611
    %628 = vst [vmem:[#allocation2 + $0x68] sm:$0xff] %v612
    %629 = vst [vmem:[#allocation2 + $0x70] sm:$0xff] %v613
    %630 = vst [vmem:[#allocation2 + $0x78] sm:$0xff] %v614
    %v631 = vld [vmem:[#allocation2] sm:$0xff]
    %v632 = vld [vmem:[#allocation2 + $0x8] sm:$0xff]
    %v633 = vld [vmem:[#allocation2 + $0x10] sm:$0xff]
    %v634 = vld [vmem:[#allocation2 + $0x18] sm:$0xff]
    %v635 = vunpack.c.l.bf16 %v631
    %v636 = vunpack.c.h.bf16 %v631
    %v637 = vunpack.c.l.bf16 %v632
    %v638 = vunpack.c.h.bf16 %v632
    %v639 = vunpack.c.l.bf16 %v633
    %v640 = vunpack.c.h.bf16 %v633
    %v641 = vunpack.c.l.bf16 %v634
    %v642 = vunpack.c.h.bf16 %v634
    %v643 = vld [vmem:[#allocation2 + $0x20] sm:$0xff]
    %v644 = vld [vmem:[#allocation2 + $0x28] sm:$0xff]
    %v645 = vld [vmem:[#allocation2 + $0x30] sm:$0xff]
    %v646 = vld [vmem:[#allocation2 + $0x38] sm:$0xff]
    %v647 = vunpack.c.l.bf16 %v643
    %v648 = vunpack.c.h.bf16 %v643
    %v649 = vunpack.c.l.bf16 %v644
    %v650 = vunpack.c.h.bf16 %v644
    %v651 = vunpack.c.l.bf16 %v645
    %v652 = vunpack.c.h.bf16 %v645
    %v653 = vunpack.c.l.bf16 %v646
    %v654 = vunpack.c.h.bf16 %v646
    %v655 = vld [vmem:[#allocation2 + $0x40] sm:$0xff]
    %v656 = vld [vmem:[#allocation2 + $0x48] sm:$0xff]
    %v657 = vld [vmem:[#allocation2 + $0x50] sm:$0xff]
    %v658 = vld [vmem:[#allocation2 + $0x58] sm:$0xff]
    %v659 = vunpack.c.l.bf16 %v655
    %v660 = vunpack.c.h.bf16 %v655
    %v661 = vunpack.c.l.bf16 %v656
    %v662 = vunpack.c.h.bf16 %v656
    %v663 = vunpack.c.l.bf16 %v657
    %v664 = vunpack.c.h.bf16 %v657
    %v665 = vunpack.c.l.bf16 %v658
    %v666 = vunpack.c.h.bf16 %v658
    %v667 = vld [vmem:[#allocation2 + $0x60] sm:$0xff]
    %v668 = vld [vmem:[#allocation2 + $0x68] sm:$0xff]
    %v669 = vld [vmem:[#allocation2 + $0x70] sm:$0xff]
    %v670 = vld [vmem:[#allocation2 + $0x78] sm:$0xff]
    %v671 = vunpack.c.l.bf16 %v667
    %v672 = vunpack.c.h.bf16 %v667
    %v673 = vunpack.c.l.bf16 %v668
    %v674 = vunpack.c.h.bf16 %v668
    %v675 = vunpack.c.l.bf16 %v669
    %v676 = vunpack.c.h.bf16 %v669
    %v677 = vunpack.c.l.bf16 %v670
    %v678 = vunpack.c.h.bf16 %v670
    %v679 = vrot.slane %v647, 7
    %v680 = vrot.slane %v648, 7
    %v681 = vrot.slane %v649, 7
    %v682 = vrot.slane %v650, 7
    %v683 = vrot.slane %v651, 7
    %v684 = vrot.slane %v652, 7
    %v685 = vrot.slane %v653, 7
    %v686 = vrot.slane %v654, 7
    %v687 = vlaneseq
    %v688 = vshrl.u32 %v687, 7
    %vm689 = vcmp.lt.s32.totalorder %v688, 1
    %v690 = vsel %vm689, %v685, %v686
    %v691 = vsel %vm689, %v684, %v685
    %v692 = vsel %vm689, %v683, %v684
    %v693 = vsel %vm689, %v682, %v683
    %v694 = vsel %vm689, %v681, %v682
    %v695 = vsel %vm689, %v680, %v681
    %v696 = vsel %vm689, %v679, %v680
    %v697 = vsel %vm689, %v686, %v679
    %v698 = vrot.slane %v671, 7
    %v699 = vrot.slane %v672, 7
    %v700 = vrot.slane %v673, 7
    %v701 = vrot.slane %v674, 7
    %v702 = vrot.slane %v675, 7
    %v703 = vrot.slane %v676, 7
    %v704 = vrot.slane %v677, 7
    %v705 = vrot.slane %v678, 7
    %v706 = vsel %vm689, %v704, %v705
    %v707 = vsel %vm689, %v703, %v704
    %v708 = vsel %vm689, %v702, %v703
    %v709 = vsel %vm689, %v701, %v702
    %v710 = vsel %vm689, %v700, %v701
    %v711 = vsel %vm689, %v699, %v700
    %v712 = vsel %vm689, %v698, %v699
    %v713 = vsel %vm689, %v705, %v698
    %v714 = vlaneseq
    %v715 = vshrl.u32 %v714, 7
    %v716 = vsub.s32 4, %v715
    %v717 = vrot.slane %v203, %v716
    %v718 = vmul.f32 %v635, %v717
    %v719 = vmul.f32 %v636, %v717
    %v720 = vmul.f32 %v637, %v717
    %v721 = vmul.f32 %v638, %v717
    %v722 = vmul.f32 %v639, %v717
    %v723 = vmul.f32 %v640, %v717
    %v724 = vmul.f32 %v641, %v717
    %v725 = vmul.f32 %v642, %v717
    %v726 = vlaneseq
    %v727 = vshrl.u32 %v726, 7
    %v728 = vsub.s32 5, %v727
    %v729 = vrot.slane %v203, %v728
    %v730 = vmul.f32 %v647, %v729
    %v731 = vmul.f32 %v648, %v729
    %v732 = vmul.f32 %v649, %v729
    %v733 = vmul.f32 %v650, %v729
    %v734 = vmul.f32 %v651, %v729
    %v735 = vmul.f32 %v652, %v729
    %v736 = vmul.f32 %v653, %v729
    %v737 = vmul.f32 %v654, %v729
    %v738 = vadd.f32 %v718, %v730
    %v739 = vadd.f32 %v719, %v731
    %v740 = vadd.f32 %v720, %v732
    %v741 = vadd.f32 %v721, %v733
    %v742 = vadd.f32 %v722, %v734
    %v743 = vadd.f32 %v723, %v735
    %v744 = vadd.f32 %v724, %v736
    %v745 = vadd.f32 %v725, %v737
    %v746 = vlaneseq
    %v747 = vshrl.u32 %v746, 7
    %v748 = vsub.s32 7, %v747
    %v749 = vrot.slane %v203, %v748
    %v750 = vmul.f32 %v659, %v749
    %v751 = vmul.f32 %v660, %v749
    %v752 = vmul.f32 %v661, %v749
    %v753 = vmul.f32 %v662, %v749
    %v754 = vmul.f32 %v663, %v749
    %v755 = vmul.f32 %v664, %v749
    %v756 = vmul.f32 %v665, %v749
    %v757 = vmul.f32 %v666, %v749
    %v758 = vadd.f32 %v738, %v750
    %v759 = vadd.f32 %v739, %v751
    %v760 = vadd.f32 %v740, %v752
    %v761 = vadd.f32 %v741, %v753
    %v762 = vadd.f32 %v742, %v754
    %v763 = vadd.f32 %v743, %v755
    %v764 = vadd.f32 %v744, %v756
    %v765 = vadd.f32 %v745, %v757
    %v766 = vlaneseq
    %v767 = vshrl.u32 %v766, 7
    %v768 = vsub.s32 0, %v767
    %v769 = vrot.slane %v204, %v768
    %v770 = vmul.f32 %v671, %v769
    %v771 = vmul.f32 %v672, %v769
    %v772 = vmul.f32 %v673, %v769
    %v773 = vmul.f32 %v674, %v769
    %v774 = vmul.f32 %v675, %v769
    %v775 = vmul.f32 %v676, %v769
    %v776 = vmul.f32 %v677, %v769
    %v777 = vmul.f32 %v678, %v769
    %v778 = vadd.f32 %v758, %v770
    %v779 = vadd.f32 %v759, %v771
    %v780 = vadd.f32 %v760, %v772
    %v781 = vadd.f32 %v761, %v773
    %v782 = vadd.f32 %v762, %v774
    %v783 = vadd.f32 %v763, %v775
    %v784 = vadd.f32 %v764, %v776
    %v785 = vadd.f32 %v765, %v777
    %v786 = vlaneseq
    %v787 = vshrl.u32 %v786, 7
    %v788 = vsub.s32 3, %v787
    %v789 = vrot.slane %v203, %v788
    %v790 = vmul.f32 %v697, %v789
    %v791 = vmul.f32 %v696, %v789
    %v792 = vmul.f32 %v695, %v789
    %v793 = vmul.f32 %v694, %v789
    %v794 = vmul.f32 %v693, %v789
    %v795 = vmul.f32 %v692, %v789
    %v796 = vmul.f32 %v691, %v789
    %v797 = vmul.f32 %v690, %v789
    %v798 = vlaneseq
    %v799 = vshrl.u32 %v798, 7
    %v800 = vsub.s32 6, %v799
    %v801 = vrot.slane %v203, %v800
    %v802 = vmul.f32 %v713, %v801
    %v803 = vmul.f32 %v712, %v801
    %v804 = vmul.f32 %v711, %v801
    %v805 = vmul.f32 %v710, %v801
    %v806 = vmul.f32 %v709, %v801
    %v807 = vmul.f32 %v708, %v801
    %v808 = vmul.f32 %v707, %v801
    %v809 = vmul.f32 %v706, %v801
    %v810 = vadd.f32 %v790, %v802
    %v811 = vadd.f32 %v791, %v803
    %v812 = vadd.f32 %v792, %v804
    %v813 = vadd.f32 %v793, %v805
    %v814 = vadd.f32 %v794, %v806
    %v815 = vadd.f32 %v795, %v807
    %v816 = vadd.f32 %v796, %v808
    %v817 = vadd.f32 %v797, %v809
    %v818 = vmul.f32 %v110, %v810
    %v819 = vmul.f32 %v115, %v811
    %v820 = vmul.f32 %v120, %v812
    %v821 = vmul.f32 %v125, %v813
    %v822 = vmul.f32 %v130, %v814
    %v823 = vmul.f32 %v135, %v815
    %v824 = vmul.f32 %v140, %v816
    %v825 = vmul.f32 %v145, %v817
    %v826 = vadd.f32 %v778, %v818
    %v827 = vadd.f32 %v779, %v819
    %v828 = vadd.f32 %v780, %v820
    %v829 = vadd.f32 %v781, %v821
    %v830 = vadd.f32 %v782, %v822
    %v831 = vadd.f32 %v783, %v823
    %v832 = vadd.f32 %v784, %v824
    %v833 = vadd.f32 %v785, %v825
    %v834 = vlaneseq
    %v835 = vshrl.u32 %v834, 7
    %v836 = vsub.s32 1, %v835
    %v837 = vrot.slane %v203, %v836
    %v838 = vmul.f32 %v666, %v837
    %v839 = vmul.f32 %v659, %v837
    %v840 = vmul.f32 %v660, %v837
    %v841 = vmul.f32 %v661, %v837
    %v842 = vmul.f32 %v662, %v837
    %v843 = vmul.f32 %v663, %v837
    %v844 = vmul.f32 %v664, %v837
    %v845 = vmul.f32 %v665, %v837
    %v846 = vlaneseq
    %v847 = vshrl.u32 %v846, 7
    %v848 = vsub.s32 2, %v847
    %v849 = vrot.slane %v203, %v848
    %v850 = vmul.f32 %v678, %v849
    %v851 = vmul.f32 %v671, %v849
    %v852 = vmul.f32 %v672, %v849
    %v853 = vmul.f32 %v673, %v849
    %v854 = vmul.f32 %v674, %v849
    %v855 = vmul.f32 %v675, %v849
    %v856 = vmul.f32 %v676, %v849
    %v857 = vmul.f32 %v677, %v849
    %v858 = vadd.f32 %v838, %v850
    %v859 = vadd.f32 %v839, %v851
    %v860 = vadd.f32 %v840, %v852
    %v861 = vadd.f32 %v841, %v853
    %v862 = vadd.f32 %v842, %v854
    %v863 = vadd.f32 %v843, %v855
    %v864 = vadd.f32 %v844, %v856
    %v865 = vadd.f32 %v845, %v857
    %v866 = vmul.f32 %v158, %v858
    %v867 = vmul.f32 %v163, %v859
    %v868 = vmul.f32 %v168, %v860
    %v869 = vmul.f32 %v173, %v861
    %v870 = vmul.f32 %v178, %v862
    %v871 = vmul.f32 %v183, %v863
    %v872 = vmul.f32 %v188, %v864
    %v873 = vmul.f32 %v193, %v865
    %v874 = vadd.f32 %v826, %v866
    %v875 = vadd.f32 %v827, %v867
    %v876 = vadd.f32 %v828, %v868
    %v877 = vadd.f32 %v829, %v869
    %v878 = vadd.f32 %v830, %v870
    %v879 = vadd.f32 %v831, %v871
    %v880 = vadd.f32 %v832, %v872
    %v881 = vadd.f32 %v833, %v873
    %v882 = vlaneseq
    %v883 = vshrl.u32 %v882, 7
    %v884 = vsub.s32 0, %v883
    %v885 = vrot.slane %v203, %v884
    %v886 = vmul.f32 %v706, %v885
    %v887 = vmul.f32 %v713, %v885
    %v888 = vmul.f32 %v712, %v885
    %v889 = vmul.f32 %v711, %v885
    %v890 = vmul.f32 %v710, %v885
    %v891 = vmul.f32 %v709, %v885
    %v892 = vmul.f32 %v708, %v885
    %v893 = vmul.f32 %v707, %v885
    %v894 = vmul.f32 %v195, %v886
    %v895 = vmul.f32 %v196, %v887
    %v896 = vmul.f32 %v197, %v888
    %v897 = vmul.f32 %v198, %v889
    %v898 = vmul.f32 %v199, %v890
    %v899 = vmul.f32 %v200, %v891
    %v900 = vmul.f32 %v201, %v892
    %v901 = vmul.f32 %v202, %v893
    %v902 = vadd.f32 %v874, %v894
    %v903 = vadd.f32 %v875, %v895
    %v904 = vadd.f32 %v876, %v896
    %v905 = vadd.f32 %v877, %v897
    %v906 = vadd.f32 %v878, %v898
    %v907 = vadd.f32 %v879, %v899
    %v908 = vadd.f32 %v880, %v900
    %v909 = vadd.f32 %v881, %v901
    %v911 = vlaneseq
    %v912 = vshrl.u32 %v911, 7
    %v913 = vsub.s32 0, %v912
    %v914 = vrot.slane %v206, %v913
    %v916 = vadd.f32 %v902, %v914
    %v917 = vadd.f32 %v903, %v914
    %v918 = vadd.f32 %v904, %v914
    %v919 = vadd.f32 %v905, %v914
    %v920 = vadd.f32 %v906, %v914
    %v921 = vadd.f32 %v907, %v914
    %v922 = vadd.f32 %v908, %v914
    %v923 = vadd.f32 %v909, %v914
    %v924 = vmax.f32 %v916, 0.0
    %v925 = vmax.f32 %v917, 0.0
    %v926 = vmax.f32 %v918, 0.0
    %v927 = vmax.f32 %v919, 0.0
    %v928 = vmax.f32 %v920, 0.0
    %v929 = vmax.f32 %v921, 0.0
    %v930 = vmax.f32 %v922, 0.0
    %v931 = vmax.f32 %v923, 0.0
    %v932 = vadd.f32 %v924, %v925
    %v933 = vadd.f32 %v932, %v926
    %v934 = vadd.f32 %v933, %v927
    %v935 = vadd.f32 %v934, %v928
    %v936 = vadd.f32 %v935, %v929
    %v937 = vadd.f32 %v936, %v930
    %v938 = vadd.f32 %v937, %v931
    %v939 = vrot.slane %v938, 4
    %v940 = vadd.f32 %v938, %v939
    %v941 = vrot.slane %v940, 2
    %v942 = vadd.f32 %v940, %v941
    %v943 = vrot.slane %v942, 1
    %v944 = vadd.f32 %v942, %v943
    %v945 = vmul.f32 %v944, 0.015625
    %v946 = vpack.c.bf16 %v945, %v945
    %v947 = vld [vmem:[%s7] sm:$0xf]
    %v948 = vld [vmem:[%s7 + $0x4] sm:$0xf]
    %v949 = vld [vmem:[%s7 + $0x8] sm:$0xf]
    %v950 = vld [vmem:[%s7 + $0xc] sm:$0xf]
    %v951 = vld [vmem:[%s7 + $0x10] sm:$0xf]
    %v952 = vld [vmem:[%s7 + $0x14] sm:$0xf]
    %v953 = vld [vmem:[%s7 + $0x18] sm:$0xf]
    %v954 = vld [vmem:[%s7 + $0x1c] sm:$0xf]
    %v955 = vld [vmem:[%s7 + $0x20] sm:$0xf]
    %v956 = vld [vmem:[%s7 + $0x24] sm:$0xf]
    %v957 = vld [vmem:[%s7 + $0x28] sm:$0xf]
    %v958 = vld [vmem:[%s7 + $0x2c] sm:$0xf]
    %v959 = vld [vmem:[%s7 + $0x30] sm:$0xf]
    %v960 = vld [vmem:[%s7 + $0x34] sm:$0xf]
    %v961 = vld [vmem:[%s7 + $0x38] sm:$0xf]
    %v962 = vld [vmem:[%s7 + $0x3c] sm:$0xf]
    %v963 = vld [vmem:[%s8] sm:$0x1]
    %v980 = vunpack.c.l.b16 %v947
    %v981 = vunpack.c.l.b16 %v948
    %v982 = vunpack.c.l.b16 %v949
    %v983 = vunpack.c.l.b16 %v950
    %v984 = vunpack.c.l.b16 %v951
    %v985 = vunpack.c.l.b16 %v952
    %v986 = vunpack.c.l.b16 %v953
    %v987 = vunpack.c.l.b16 %v954
    %v988 = vunpack.c.l.b16 %v955
    %v989 = vunpack.c.l.b16 %v956
    %v990 = vunpack.c.l.b16 %v957
    %v991 = vunpack.c.l.b16 %v958
    %v992 = vunpack.c.l.b16 %v959
    %v993 = vunpack.c.l.b16 %v960
    %v994 = vunpack.c.l.b16 %v961
    %v995 = vunpack.c.l.b16 %v962
    %v996 = vpack.c.b16 %v981, %v980
    %v997 = vpack.c.b16 %v983, %v982
    %v998 = vpack.c.b16 %v985, %v984
    %v999 = vpack.c.b16 %v987, %v986
    %v1000 = vpack.c.b16 %v989, %v988
    %v1001 = vpack.c.b16 %v991, %v990
    %v1002 = vpack.c.b16 %v993, %v992
    %v1003 = vpack.c.b16 %v995, %v994
    %1012 = vmatprep.subr.bf16.mxu0 0
    %1013 = vmatpush1.bf16.msra.mxu0 %v996
    %1014 = vmatprep.subr.bf16.mxu0 0
    %1015 = vmatpush1.bf16.msra.mxu0 %v997
    %1016 = vmatprep.subr.bf16.mxu0 0
    %1017 = vmatpush1.bf16.msra.mxu0 %v998
    %1018 = vmatprep.subr.bf16.mxu0 0
    %1019 = vmatpush1.bf16.msra.mxu0 %v999
    %1020 = vmatprep.subr.bf16.mxu0 0
    %1021 = vmatpush1.bf16.msra.mxu0 %v1000
    %1022 = vmatprep.subr.bf16.mxu0 0
    %1023 = vmatpush1.bf16.msra.mxu0 %v1001
    %1024 = vmatprep.subr.bf16.mxu0 0
    %1025 = vmatpush1.bf16.msra.mxu0 %v1002
    %1026 = vmatprep.subr.bf16.mxu0 0
    %1027 = vmatpush1.bf16.msra.mxu0 %v1003
    %1028 = vmatprep.subr.bf16.mxu0 0
    %1029 = vmatpush1.bf16.msra.mxu0 0
    %1030 = vmatprep.subr.bf16.mxu0 0
    %1031 = vmatpush1.bf16.msra.mxu0 0
    %1032 = vmatprep.subr.bf16.mxu0 0
    %1033 = vmatpush1.bf16.msra.mxu0 0
    %1034 = vmatprep.subr.bf16.mxu0 0
    %1035 = vmatpush1.bf16.msra.mxu0 0
    %1036 = vmatprep.subr.bf16.mxu0 0
    %1037 = vmatpush1.bf16.msra.mxu0 0
    %1038 = vmatprep.subr.bf16.mxu0 0
    %1039 = vmatpush1.bf16.msra.mxu0 0
    %1040 = vmatprep.subr.bf16.mxu0 0
    %1041 = vmatpush1.bf16.msra.mxu0 0
    %1042 = vmatprep.subr.bf16.mxu0 0
    %1043 = vmatpush1.bf16.msra.mxu0 0
    %1044 = vmatprep.mubr.bf16.mxu0 0
    %1045 = vmatmul.mubr.bf16.gmra.mrb[0].mxu0 %v946
    %v1046 = vpop.f32.mrb[0].mxu0
    %v1047 = vadd.f32 %v963, %v1046
    %v1048 = vpop.f32.mrb[0].mxu0
    %v1049 = vpop.f32.mrb[0].mxu0
    %v1050 = vpop.f32.mrb[0].mxu0
    %1051 = vdwg.mxu0
    %v1052 = vmax.f32 %v1047, 0.0
    %v1053 = vpack.c.bf16 %v1052, %v1052
    %v1054 = vld [vmem:[#allocation8] sm:$0xf]
    %v1055 = vld [vmem:[#allocation8 + $0x4] sm:$0xf]
    %v1056 = vld [vmem:[#allocation8 + $0x8] sm:$0xf]
    %v1057 = vld [vmem:[#allocation8 + $0xc] sm:$0xf]
    %v1058 = vld [vmem:[#allocation8 + $0x10] sm:$0xf]
    %v1059 = vld [vmem:[#allocation8 + $0x14] sm:$0xf]
    %v1060 = vld [vmem:[#allocation8 + $0x18] sm:$0xf]
    %v1061 = vld [vmem:[#allocation8 + $0x1c] sm:$0xf]
    %v1062 = vld [vmem:[#allocation8 + $0x20] sm:$0xf]
    %v1063 = vld [vmem:[#allocation8 + $0x24] sm:$0xf]
    %v1064 = vld [vmem:[#allocation8 + $0x28] sm:$0xf]
    %v1065 = vld [vmem:[#allocation8 + $0x2c] sm:$0xf]
    %v1066 = vld [vmem:[#allocation8 + $0x30] sm:$0xf]
    %v1067 = vld [vmem:[#allocation8 + $0x34] sm:$0xf]
    %v1068 = vld [vmem:[#allocation8 + $0x38] sm:$0xf]
    %v1069 = vld [vmem:[#allocation8 + $0x3c] sm:$0xf]
    %v1070 = vld [vmem:[%s10] sm:$0x1]
    %v1087 = vunpack.c.l.b16 %v1054
    %v1088 = vunpack.c.l.b16 %v1055
    %v1089 = vunpack.c.l.b16 %v1056
    %v1090 = vunpack.c.l.b16 %v1057
    %v1091 = vunpack.c.l.b16 %v1058
    %v1092 = vunpack.c.l.b16 %v1059
    %v1093 = vunpack.c.l.b16 %v1060
    %v1094 = vunpack.c.l.b16 %v1061
    %v1095 = vunpack.c.l.b16 %v1062
    %v1096 = vunpack.c.l.b16 %v1063
    %v1097 = vunpack.c.l.b16 %v1064
    %v1098 = vunpack.c.l.b16 %v1065
    %v1099 = vunpack.c.l.b16 %v1066
    %v1100 = vunpack.c.l.b16 %v1067
    %v1101 = vunpack.c.l.b16 %v1068
    %v1102 = vunpack.c.l.b16 %v1069
    %v1103 = vpack.c.b16 %v1088, %v1087
    %v1104 = vpack.c.b16 %v1090, %v1089
    %v1105 = vpack.c.b16 %v1092, %v1091
    %v1106 = vpack.c.b16 %v1094, %v1093
    %v1107 = vpack.c.b16 %v1096, %v1095
    %v1108 = vpack.c.b16 %v1098, %v1097
    %v1109 = vpack.c.b16 %v1100, %v1099
    %v1110 = vpack.c.b16 %v1102, %v1101
    %1119 = vmatprep.subr.bf16.mxu0 0
    %1120 = vmatpush1.bf16.msra.mxu0 %v1103
    %1121 = vmatprep.subr.bf16.mxu0 0
    %1122 = vmatpush1.bf16.msra.mxu0 %v1104
    %1123 = vmatprep.subr.bf16.mxu0 0
    %1124 = vmatpush1.bf16.msra.mxu0 %v1105
    %1125 = vmatprep.subr.bf16.mxu0 0
    %1126 = vmatpush1.bf16.msra.mxu0 %v1106
    %1127 = vmatprep.subr.bf16.mxu0 0
    %1128 = vmatpush1.bf16.msra.mxu0 %v1107
    %1129 = vmatprep.subr.bf16.mxu0 0
    %1130 = vmatpush1.bf16.msra.mxu0 %v1108
    %1131 = vmatprep.subr.bf16.mxu0 0
    %1132 = vmatpush1.bf16.msra.mxu0 %v1109
    %1133 = vmatprep.subr.bf16.mxu0 0
    %1134 = vmatpush1.bf16.msra.mxu0 %v1110
    %1135 = vmatprep.subr.bf16.mxu0 0
    %1136 = vmatpush1.bf16.msra.mxu0 0
    %1137 = vmatprep.subr.bf16.mxu0 0
    %1138 = vmatpush1.bf16.msra.mxu0 0
    %1139 = vmatprep.subr.bf16.mxu0 0
    %1140 = vmatpush1.bf16.msra.mxu0 0
    %1141 = vmatprep.subr.bf16.mxu0 0
    %1142 = vmatpush1.bf16.msra.mxu0 0
    %1143 = vmatprep.subr.bf16.mxu0 0
    %1144 = vmatpush1.bf16.msra.mxu0 0
    %1145 = vmatprep.subr.bf16.mxu0 0
    %1146 = vmatpush1.bf16.msra.mxu0 0
    %1147 = vmatprep.subr.bf16.mxu0 0
    %1148 = vmatpush1.bf16.msra.mxu0 0
    %1149 = vmatprep.subr.bf16.mxu0 0
    %1150 = vmatpush1.bf16.msra.mxu0 0
    %1151 = vmatprep.mubr.bf16.mxu0 0
    %1152 = vmatmul.mubr.bf16.gmra.mrb[0].mxu0 %v1053
    %v1153 = vpop.f32.mrb[0].mxu0
    %v1154 = vadd.f32 %v1070, %v1153
    %v1155 = vpop.f32.mrb[0].mxu0
    %v1156 = vpop.f32.mrb[0].mxu0
    %v1157 = vpop.f32.mrb[0].mxu0
    %1158 = vdwg.mxu0
    %v1159 = vxor.u32 %v1154, 2147483648
    %v1160 = vmul.f32 %v1159, 1.442695
    %v1161 = vpow.pop %v1160
    %v1162 = vadd.f32 %v1161, 1.0
    %v1163 = vrcp.pop %v1162
    %v1164 = vmul.f32 1.0, %v1163
    %v1165 = vlaneseq
    %v1166 = vshrl.u32 %v1165, 7
    %v1167 = vsub.s32 0, %v1166
    %v1168 = vrot.slane %v1164, %v1167
    %v1169 = vmul.f32 %v924, %v1168
    %v1170 = vmul.f32 %v925, %v1168
    %v1171 = vmul.f32 %v926, %v1168
    %v1172 = vmul.f32 %v927, %v1168
    %v1173 = vmul.f32 %v928, %v1168
    %v1174 = vmul.f32 %v929, %v1168
    %v1175 = vmul.f32 %v930, %v1168
    %v1176 = vmul.f32 %v931, %v1168
    %v1177 = vpack.c.bf16 %v1170, %v1169
    %v1178 = vpack.c.bf16 %v1172, %v1171
    %v1179 = vpack.c.bf16 %v1174, %v1173
    %v1180 = vpack.c.bf16 %v1176, %v1175
    %v1181 = vld [vmem:[#allocation9] sm:$0xf]
    %v1182 = vld [vmem:[#allocation9 + $0x4] sm:$0xf]
    %v1183 = vld [vmem:[#allocation9 + $0x8] sm:$0xf]
    %v1184 = vld [vmem:[#allocation9 + $0xc] sm:$0xf]
    %v1185 = vld [vmem:[#allocation9 + $0x10] sm:$0xf]
    %v1186 = vld [vmem:[#allocation9 + $0x14] sm:$0xf]
    %v1187 = vld [vmem:[#allocation9 + $0x18] sm:$0xf]
    %v1188 = vld [vmem:[#allocation9 + $0x1c] sm:$0xf]
    %v1189 = vld [vmem:[#allocation9 + $0x20] sm:$0xf]
    %v1190 = vld [vmem:[#allocation9 + $0x24] sm:$0xf]
    %v1191 = vld [vmem:[#allocation9 + $0x28] sm:$0xf]
    %v1192 = vld [vmem:[#allocation9 + $0x2c] sm:$0xf]
    %v1193 = vld [vmem:[#allocation9 + $0x30] sm:$0xf]
    %v1194 = vld [vmem:[#allocation9 + $0x34] sm:$0xf]
    %v1195 = vld [vmem:[#allocation9 + $0x38] sm:$0xf]
    %v1196 = vld [vmem:[#allocation9 + $0x3c] sm:$0xf]
    %v1198 = vlaneseq
    %v1199 = vshrl.u32 %v1198, 7
    %v1200 = vsub.s32 0, %v1199
    %v1201 = vrot.slane %v207, %v1200
    %v1219 = vunpack.c.l.b16 %v1181
    %v1220 = vunpack.c.l.b16 %v1182
    %v1221 = vunpack.c.l.b16 %v1183
    %v1222 = vunpack.c.l.b16 %v1184
    %v1223 = vunpack.c.l.b16 %v1185
    %v1224 = vunpack.c.l.b16 %v1186
    %v1225 = vunpack.c.l.b16 %v1187
    %v1226 = vunpack.c.l.b16 %v1188
    %v1227 = vunpack.c.l.b16 %v1189
    %v1228 = vunpack.c.l.b16 %v1190
    %v1229 = vunpack.c.l.b16 %v1191
    %v1230 = vunpack.c.l.b16 %v1192
    %v1231 = vunpack.c.l.b16 %v1193
    %v1232 = vunpack.c.l.b16 %v1194
    %v1233 = vunpack.c.l.b16 %v1195
    %v1234 = vunpack.c.l.b16 %v1196
    %v1235 = vpack.c.b16 %v1220, %v1219
    %v1236 = vpack.c.b16 %v1222, %v1221
    %v1237 = vpack.c.b16 %v1224, %v1223
    %v1238 = vpack.c.b16 %v1226, %v1225
    %v1239 = vpack.c.b16 %v1228, %v1227
    %v1240 = vpack.c.b16 %v1230, %v1229
    %v1241 = vpack.c.b16 %v1232, %v1231
    %v1242 = vpack.c.b16 %v1234, %v1233
    %1251 = vmatprep.subr.bf16.mxu0 0
    %1252 = vmatpush1.bf16.msra.mxu0 %v1235
    %1253 = vmatprep.subr.bf16.mxu0 0
    %1254 = vmatpush1.bf16.msra.mxu0 %v1236
    %1255 = vmatprep.subr.bf16.mxu0 0
    %1256 = vmatpush1.bf16.msra.mxu0 %v1237
    %1257 = vmatprep.subr.bf16.mxu0 0
    %1258 = vmatpush1.bf16.msra.mxu0 %v1238
    %1259 = vmatprep.subr.bf16.mxu0 0
    %1260 = vmatpush1.bf16.msra.mxu0 %v1239
    %1261 = vmatprep.subr.bf16.mxu0 0
    %1262 = vmatpush1.bf16.msra.mxu0 %v1240
    %1263 = vmatprep.subr.bf16.mxu0 0
    %1264 = vmatpush1.bf16.msra.mxu0 %v1241
    %1265 = vmatprep.subr.bf16.mxu0 0
    %1266 = vmatpush1.bf16.msra.mxu0 %v1242
    %1267 = vmatprep.subr.bf16.mxu0 0
    %1268 = vmatpush1.bf16.msra.mxu0 0
    %1269 = vmatprep.subr.bf16.mxu0 0
    %1270 = vmatpush1.bf16.msra.mxu0 0
    %1271 = vmatprep.subr.bf16.mxu0 0
    %1272 = vmatpush1.bf16.msra.mxu0 0
    %1273 = vmatprep.subr.bf16.mxu0 0
    %1274 = vmatpush1.bf16.msra.mxu0 0
    %1275 = vmatprep.subr.bf16.mxu0 0
    %1276 = vmatpush1.bf16.msra.mxu0 0
    %1277 = vmatprep.subr.bf16.mxu0 0
    %1278 = vmatpush1.bf16.msra.mxu0 0
    %1279 = vmatprep.subr.bf16.mxu0 0
    %1280 = vmatpush1.bf16.msra.mxu0 0
    %1281 = vmatprep.subr.bf16.mxu0 0
    %1282 = vmatpush1.bf16.msra.mxu0 0
    %1283 = vmatprep.mubr.bf16.mxu0 0
    %1284 = vmatmul.mubr.bf16.gmra.mrb[0].mxu0 %v1177
    %v1285 = vpop.f32.mrb[0].mxu0
    %v1286 = vadd.f32 %v1201, %v1285
    %v1287 = vpop.f32.mrb[0].mxu0
    %v1288 = vpop.f32.mrb[0].mxu0
    %v1289 = vadd.f32 %v1201, %v1288
    %v1290 = vpop.f32.mrb[0].mxu0
    %1291 = vmatprep.mubr.bf16.mxu0 0
    %1292 = vmatmul.mubr.bf16.gmra.mrb[0].mxu0 %v1178
    %v1293 = vpop.f32.mrb[0].mxu0
    %v1294 = vadd.f32 %v1201, %v1293
    %v1295 = vpop.f32.mrb[0].mxu0
    %v1296 = vpop.f32.mrb[0].mxu0
    %v1297 = vadd.f32 %v1201, %v1296
    %v1298 = vpop.f32.mrb[0].mxu0
    %1299 = vmatprep.mubr.bf16.mxu0 0
    %1300 = vmatmul.mubr.bf16.gmra.mrb[0].mxu0 %v1179
    %v1301 = vpop.f32.mrb[0].mxu0
    %v1302 = vadd.f32 %v1201, %v1301
    %v1303 = vpop.f32.mrb[0].mxu0
    %v1304 = vpop.f32.mrb[0].mxu0
    %v1305 = vadd.f32 %v1201, %v1304
    %v1306 = vpop.f32.mrb[0].mxu0
    %1307 = vmatprep.mubr.bf16.mxu0 0
    %1308 = vmatmul.mubr.bf16.gmra.mrb[0].mxu0 %v1180
    %v1309 = vpop.f32.mrb[0].mxu0
    %v1310 = vadd.f32 %v1201, %v1309
    %v1311 = vpop.f32.mrb[0].mxu0
    %v1312 = vpop.f32.mrb[0].mxu0
    %v1313 = vadd.f32 %v1201, %v1312
    %v1314 = vpop.f32.mrb[0].mxu0
    %1315 = vdwg.mxu0
    %v1316 = vpack.c.bf16 %v1289, %v1286
    %v1317 = vpack.c.bf16 %v1297, %v1294
    %v1318 = vpack.c.bf16 %v1305, %v1302
    %v1319 = vpack.c.bf16 %v1313, %v1310
    %v1324 = vunpack.c.l.b16 %v1316
    %v1325 = vunpack.c.h.b16 %v1316
    %v1326 = vunpack.c.l.b16 %v1317
    %v1327 = vunpack.c.h.b16 %v1317
    %v1328 = vunpack.c.l.b16 %v1318
    %v1329 = vunpack.c.h.b16 %v1318
    %v1330 = vunpack.c.l.b16 %v1319
    %v1331 = vunpack.c.h.b16 %v1319
    %v1332 = vpack.c.b16 %v1324, %v1324
    %v1333 = vpack.c.b16 %v1325, %v1325
    %v1334 = vpack.c.b16 %v1326, %v1326
    %v1335 = vpack.c.b16 %v1327, %v1327
    %v1336 = vpack.c.b16 %v1328, %v1328
    %v1337 = vpack.c.b16 %v1329, %v1329
    %v1338 = vpack.c.b16 %v1330, %v1330
    %v1339 = vpack.c.b16 %v1331, %v1331
    %1348 = vst [vmem:[#allocation11] sm:$0xf] %v1332
    %1349 = vst [vmem:[#allocation11 + $0x4] sm:$0xf] %v1333
    %1350 = vst [vmem:[#allocation11 + $0x8] sm:$0xf] %v1334
    %1351 = vst [vmem:[#allocation11 + $0xc] sm:$0xf] %v1335
    %1352 = vst [vmem:[#allocation11 + $0x10] sm:$0xf] %v1336
    %1353 = vst [vmem:[#allocation11 + $0x14] sm:$0xf] %v1337
    %1354 = vst [vmem:[#allocation11 + $0x18] sm:$0xf] %v1338
    %1355 = vst [vmem:[#allocation11 + $0x1c] sm:$0xf] %v1339
    %s1356 = scalar_lea.vmem [#allocation3], 128
    %v1357 = vld [vmem:[%s1356] sm:$0xf]
    %v1358 = vld [vmem:[%s1356 + $0x4] sm:$0xf]
    %v1359 = vld [vmem:[%s1356 + $0x8] sm:$0xf]
    %v1360 = vld [vmem:[%s1356 + $0xc] sm:$0xf]
    %v1361 = vld [vmem:[%s1356 + $0x10] sm:$0xf]
    %v1362 = vld [vmem:[%s1356 + $0x14] sm:$0xf]
    %v1363 = vld [vmem:[%s1356 + $0x18] sm:$0xf]
    %v1364 = vld [vmem:[%s1356 + $0x1c] sm:$0xf]
    %v1365 = vld [vmem:[%s1356 + $0x20] sm:$0xf]
    %v1366 = vld [vmem:[%s1356 + $0x24] sm:$0xf]
    %v1367 = vld [vmem:[%s1356 + $0x28] sm:$0xf]
    %v1368 = vld [vmem:[%s1356 + $0x2c] sm:$0xf]
    %v1369 = vld [vmem:[%s1356 + $0x30] sm:$0xf]
    %v1370 = vld [vmem:[%s1356 + $0x34] sm:$0xf]
    %v1371 = vld [vmem:[%s1356 + $0x38] sm:$0xf]
    %v1372 = vld [vmem:[%s1356 + $0x3c] sm:$0xf]
    %v1373 = vld [vmem:[%s1356 + $0x40] sm:$0xf]
    %v1374 = vld [vmem:[%s1356 + $0x44] sm:$0xf]
    %v1375 = vld [vmem:[%s1356 + $0x48] sm:$0xf]
    %v1376 = vld [vmem:[%s1356 + $0x4c] sm:$0xf]
    %v1377 = vld [vmem:[%s1356 + $0x50] sm:$0xf]
    %v1378 = vld [vmem:[%s1356 + $0x54] sm:$0xf]
    %v1379 = vld [vmem:[%s1356 + $0x58] sm:$0xf]
    %v1380 = vld [vmem:[%s1356 + $0x5c] sm:$0xf]
    %v1381 = vld [vmem:[%s1356 + $0x60] sm:$0xf]
    %v1382 = vld [vmem:[%s1356 + $0x64] sm:$0xf]
    %v1383 = vld [vmem:[%s1356 + $0x68] sm:$0xf]
    %v1384 = vld [vmem:[%s1356 + $0x6c] sm:$0xf]
    %v1385 = vld [vmem:[%s1356 + $0x70] sm:$0xf]
    %v1386 = vld [vmem:[%s1356 + $0x74] sm:$0xf]
    %v1387 = vld [vmem:[%s1356 + $0x78] sm:$0xf]
    %v1388 = vld [vmem:[%s1356 + $0x7c] sm:$0xf]
    %v1389 = vld [vmem:[%s3] sm:$0xf]
    %v1390 = vld [vmem:[%s3 + $0x4] sm:$0xf]
    %v1391 = vld [vmem:[%s3 + $0x8] sm:$0xf]
    %v1392 = vld [vmem:[%s3 + $0xc] sm:$0xf]
    %v1393 = vld [vmem:[%s3 + $0x10] sm:$0xf]
    %v1394 = vld [vmem:[%s3 + $0x14] sm:$0xf]
    %v1395 = vld [vmem:[%s3 + $0x18] sm:$0xf]
    %v1396 = vld [vmem:[%s3 + $0x1c] sm:$0xf]
    %v1397 = vld [vmem:[%s3 + $0x20] sm:$0xf]
    %v1398 = vld [vmem:[%s3 + $0x24] sm:$0xf]
    %v1399 = vld [vmem:[%s3 + $0x28] sm:$0xf]
    %v1400 = vld [vmem:[%s3 + $0x2c] sm:$0xf]
    %v1401 = vld [vmem:[%s3 + $0x30] sm:$0xf]
    %v1402 = vld [vmem:[%s3 + $0x34] sm:$0xf]
    %v1403 = vld [vmem:[%s3 + $0x38] sm:$0xf]
    %v1404 = vld [vmem:[%s3 + $0x3c] sm:$0xf]
    %v1437 = vunpack.c.l.b16 %v1357
    %v1438 = vunpack.c.l.b16 %v1358
    %v1439 = vunpack.c.l.b16 %v1359
    %v1440 = vunpack.c.l.b16 %v1360
    %v1441 = vunpack.c.l.b16 %v1361
    %v1442 = vunpack.c.l.b16 %v1362
    %v1443 = vunpack.c.l.b16 %v1363
    %v1444 = vunpack.c.l.b16 %v1364
    %v1445 = vunpack.c.l.b16 %v1365
    %v1446 = vunpack.c.l.b16 %v1366
    %v1447 = vunpack.c.l.b16 %v1367
    %v1448 = vunpack.c.l.b16 %v1368
    %v1449 = vunpack.c.l.b16 %v1369
    %v1450 = vunpack.c.l.b16 %v1370
    %v1451 = vunpack.c.l.b16 %v1371
    %v1452 = vunpack.c.l.b16 %v1372
    %v1453 = vunpack.c.l.b16 %v1373
    %v1454 = vunpack.c.l.b16 %v1374
    %v1455 = vunpack.c.l.b16 %v1375
    %v1456 = vunpack.c.l.b16 %v1376
    %v1457 = vunpack.c.l.b16 %v1377
    %v1458 = vunpack.c.l.b16 %v1378
    %v1459 = vunpack.c.l.b16 %v1379
    %v1460 = vunpack.c.l.b16 %v1380
    %v1461 = vunpack.c.l.b16 %v1381
    %v1462 = vunpack.c.l.b16 %v1382
    %v1463 = vunpack.c.l.b16 %v1383
    %v1464 = vunpack.c.l.b16 %v1384
    %v1465 = vunpack.c.l.b16 %v1385
    %v1466 = vunpack.c.l.b16 %v1386
    %v1467 = vunpack.c.l.b16 %v1387
    %v1468 = vunpack.c.l.b16 %v1388
    %v1469 = vpack.c.b16 %v1438, %v1437
    %v1470 = vpack.c.b16 %v1440, %v1439
    %v1471 = vpack.c.b16 %v1442, %v1441
    %v1472 = vpack.c.b16 %v1444, %v1443
    %v1473 = vpack.c.b16 %v1446, %v1445
    %v1474 = vpack.c.b16 %v1448, %v1447
    %v1475 = vpack.c.b16 %v1450, %v1449
    %v1476 = vpack.c.b16 %v1452, %v1451
    %v1477 = vpack.c.b16 %v1454, %v1453
    %v1478 = vpack.c.b16 %v1456, %v1455
    %v1479 = vpack.c.b16 %v1458, %v1457
    %v1480 = vpack.c.b16 %v1460, %v1459
    %v1481 = vpack.c.b16 %v1462, %v1461
    %v1482 = vpack.c.b16 %v1464, %v1463
    %v1483 = vpack.c.b16 %v1466, %v1465
    %v1484 = vpack.c.b16 %v1468, %v1467
    %v1517 = vunpack.c.l.b16 %v1389
    %v1518 = vunpack.c.l.b16 %v1390
    %v1519 = vunpack.c.l.b16 %v1391
    %v1520 = vunpack.c.l.b16 %v1392
    %v1521 = vunpack.c.l.b16 %v1393
    %v1522 = vunpack.c.l.b16 %v1394
    %v1523 = vunpack.c.l.b16 %v1395
    %v1524 = vunpack.c.l.b16 %v1396
    %v1525 = vunpack.c.l.b16 %v1397
    %v1526 = vunpack.c.l.b16 %v1398
    %v1527 = vunpack.c.l.b16 %v1399
    %v1528 = vunpack.c.l.b16 %v1400
    %v1529 = vunpack.c.l.b16 %v1401
    %v1530 = vunpack.c.l.b16 %v1402
    %v1531 = vunpack.c.l.b16 %v1403
    %v1532 = vunpack.c.l.b16 %v1404
    %v1533 = vpack.c.b16 %v1518, %v1517
    %v1534 = vpack.c.b16 %v1520, %v1519
    %v1535 = vpack.c.b16 %v1522, %v1521
    %v1536 = vpack.c.b16 %v1524, %v1523
    %v1537 = vpack.c.b16 %v1526, %v1525
    %v1538 = vpack.c.b16 %v1528, %v1527
    %v1539 = vpack.c.b16 %v1530, %v1529
    %v1540 = vpack.c.b16 %v1532, %v1531
    %1549 = vmatprep.subr.bf16.mxu0 0
    %1550 = vmatpush1.bf16.msra.mxu0 %v1533
    %1551 = vmatprep.subr.bf16.mxu0 0
    %1552 = vmatpush1.bf16.msra.mxu0 %v1534
    %1553 = vmatprep.subr.bf16.mxu0 0
    %1554 = vmatpush1.bf16.msra.mxu0 %v1535
    %1555 = vmatprep.subr.bf16.mxu0 0
    %1556 = vmatpush1.bf16.msra.mxu0 %v1536
    %1557 = vmatprep.subr.bf16.mxu0 0
    %1558 = vmatpush1.bf16.msra.mxu0 %v1537
    %1559 = vmatprep.subr.bf16.mxu0 0
    %1560 = vmatpush1.bf16.msra.mxu0 %v1538
    %1561 = vmatprep.subr.bf16.mxu0 0
    %1562 = vmatpush1.bf16.msra.mxu0 %v1539
    %1563 = vmatprep.subr.bf16.mxu0 0
    %1564 = vmatpush1.bf16.msra.mxu0 %v1540
    %1565 = vmatprep.subr.bf16.mxu0 0
    %1566 = vmatpush1.bf16.msra.mxu0 0
    %1567 = vmatprep.subr.bf16.mxu0 0
    %1568 = vmatpush1.bf16.msra.mxu0 0
    %1569 = vmatprep.subr.bf16.mxu0 0
    %1570 = vmatpush1.bf16.msra.mxu0 0
    %1571 = vmatprep.subr.bf16.mxu0 0
    %1572 = vmatpush1.bf16.msra.mxu0 0
    %1573 = vmatprep.subr.bf16.mxu0 0
    %1574 = vmatpush1.bf16.msra.mxu0 0
    %1575 = vmatprep.subr.bf16.mxu0 0
    %1576 = vmatpush1.bf16.msra.mxu0 0
    %1577 = vmatprep.subr.bf16.mxu0 0
    %1578 = vmatpush1.bf16.msra.mxu0 0
    %1579 = vmatprep.subr.bf16.mxu0 0
    %1580 = vmatpush1.bf16.msra.mxu0 0
    %1581 = vmatprep.mubr.bf16.mxu0 0
    %1582 = vmatmul.mubr.bf16.gmra.mrb[0].mxu0 %v1469
    %v1583 = vpop.f32.mrb[0].mxu0
    %v1584 = vadd.f32 %v260, %v1583
    %v1585 = vpop.f32.mrb[0].mxu0
    %v1586 = vpop.f32.mrb[0].mxu0
    %v1587 = vadd.f32 %v260, %v1586
    %v1588 = vpop.f32.mrb[0].mxu0
    %1589 = vmatprep.mubr.bf16.mxu0 0
    %1590 = vmatmul.mubr.bf16.gmra.mrb[0].mxu0 %v1470
    %v1591 = vpop.f32.mrb[0].mxu0
    %v1592 = vadd.f32 %v260, %v1591
    %v1593 = vpop.f32.mrb[0].mxu0
    %v1594 = vpop.f32.mrb[0].mxu0
    %v1595 = vadd.f32 %v260, %v1594
    %v1596 = vpop.f32.mrb[0].mxu0
    %1597 = vmatprep.mubr.bf16.mxu0 0
    %1598 = vmatmul.mubr.bf16.gmra.mrb[0].mxu0 %v1471
    %v1599 = vpop.f32.mrb[0].mxu0
    %v1600 = vadd.f32 %v260, %v1599
    %v1601 = vpop.f32.mrb[0].mxu0
    %v1602 = vpop.f32.mrb[0].mxu0
    %v1603 = vadd.f32 %v260, %v1602
    %v1604 = vpop.f32.mrb[0].mxu0
    %1605 = vmatprep.mubr.bf16.mxu0 0
    %1606 = vmatmul.mubr.bf16.gmra.mrb[0].mxu0 %v1472
    %v1607 = vpop.f32.mrb[0].mxu0
    %v1608 = vadd.f32 %v260, %v1607
    %v1609 = vpop.f32.mrb[0].mxu0
    %v1610 = vpop.f32.mrb[0].mxu0
    %v1611 = vadd.f32 %v260, %v1610
    %v1612 = vpop.f32.mrb[0].mxu0
    %1613 = vmatprep.mubr.bf16.mxu0 0
    %1614 = vmatmul.mubr.bf16.gmra.mrb[0].mxu0 %v1473
    %v1615 = vpop.f32.mrb[0].mxu0
    %v1616 = vadd.f32 %v260, %v1615
    %v1617 = vpop.f32.mrb[0].mxu0
    %v1618 = vpop.f32.mrb[0].mxu0
    %v1619 = vadd.f32 %v260, %v1618
    %v1620 = vpop.f32.mrb[0].mxu0
    %1621 = vmatprep.mubr.bf16.mxu0 0
    %1622 = vmatmul.mubr.bf16.gmra.mrb[0].mxu0 %v1474
    %v1623 = vpop.f32.mrb[0].mxu0
    %v1624 = vadd.f32 %v260, %v1623
    %v1625 = vpop.f32.mrb[0].mxu0
    %v1626 = vpop.f32.mrb[0].mxu0
    %v1627 = vadd.f32 %v260, %v1626
    %v1628 = vpop.f32.mrb[0].mxu0
    %1629 = vmatprep.mubr.bf16.mxu0 0
    %1630 = vmatmul.mubr.bf16.gmra.mrb[0].mxu0 %v1475
    %v1631 = vpop.f32.mrb[0].mxu0
    %v1632 = vadd.f32 %v260, %v1631
    %v1633 = vpop.f32.mrb[0].mxu0
    %v1634 = vpop.f32.mrb[0].mxu0
    %v1635 = vadd.f32 %v260, %v1634
    %v1636 = vpop.f32.mrb[0].mxu0
    %1637 = vmatprep.mubr.bf16.mxu0 0
    %1638 = vmatmul.mubr.bf16.gmra.mrb[0].mxu0 %v1476
    %v1639 = vpop.f32.mrb[0].mxu0
    %v1640 = vadd.f32 %v260, %v1639
    %v1641 = vpop.f32.mrb[0].mxu0
    %v1642 = vpop.f32.mrb[0].mxu0
    %v1643 = vadd.f32 %v260, %v1642
    %v1644 = vpop.f32.mrb[0].mxu0
    %1645 = vmatprep.mubr.bf16.mxu0 0
    %1646 = vmatmul.mubr.bf16.gmra.mrb[0].mxu0 %v1477
    %v1647 = vpop.f32.mrb[0].mxu0
    %v1648 = vadd.f32 %v260, %v1647
    %v1649 = vpop.f32.mrb[0].mxu0
    %v1650 = vpop.f32.mrb[0].mxu0
    %v1651 = vadd.f32 %v260, %v1650
    %v1652 = vpop.f32.mrb[0].mxu0
    %1653 = vmatprep.mubr.bf16.mxu0 0
    %1654 = vmatmul.mubr.bf16.gmra.mrb[0].mxu0 %v1478
    %v1655 = vpop.f32.mrb[0].mxu0
    %v1656 = vadd.f32 %v260, %v1655
    %v1657 = vpop.f32.mrb[0].mxu0
    %v1658 = vpop.f32.mrb[0].mxu0
    %v1659 = vadd.f32 %v260, %v1658
    %v1660 = vpop.f32.mrb[0].mxu0
    %1661 = vmatprep.mubr.bf16.mxu0 0
    %1662 = vmatmul.mubr.bf16.gmra.mrb[0].mxu0 %v1479
    %v1663 = vpop.f32.mrb[0].mxu0
    %v1664 = vadd.f32 %v260, %v1663
    %v1665 = vpop.f32.mrb[0].mxu0
    %v1666 = vpop.f32.mrb[0].mxu0
    %v1667 = vadd.f32 %v260, %v1666
    %v1668 = vpop.f32.mrb[0].mxu0
    %1669 = vmatprep.mubr.bf16.mxu0 0
    %1670 = vmatmul.mubr.bf16.gmra.mrb[0].mxu0 %v1480
    %v1671 = vpop.f32.mrb[0].mxu0
    %v1672 = vadd.f32 %v260, %v1671
    %v1673 = vpop.f32.mrb[0].mxu0
    %v1674 = vpop.f32.mrb[0].mxu0
    %v1675 = vadd.f32 %v260, %v1674
    %v1676 = vpop.f32.mrb[0].mxu0
    %1677 = vmatprep.mubr.bf16.mxu0 0
    %1678 = vmatmul.mubr.bf16.gmra.mrb[0].mxu0 %v1481
    %v1679 = vpop.f32.mrb[0].mxu0
    %v1680 = vadd.f32 %v260, %v1679
    %v1681 = vpop.f32.mrb[0].mxu0
    %v1682 = vpop.f32.mrb[0].mxu0
    %v1683 = vadd.f32 %v260, %v1682
    %v1684 = vpop.f32.mrb[0].mxu0
    %1685 = vmatprep.mubr.bf16.mxu0 0
    %1686 = vmatmul.mubr.bf16.gmra.mrb[0].mxu0 %v1482
    %v1687 = vpop.f32.mrb[0].mxu0
    %v1688 = vadd.f32 %v260, %v1687
    %v1689 = vpop.f32.mrb[0].mxu0
    %v1690 = vpop.f32.mrb[0].mxu0
    %v1691 = vadd.f32 %v260, %v1690
    %v1692 = vpop.f32.mrb[0].mxu0
    %1693 = vmatprep.mubr.bf16.mxu0 0
    %1694 = vmatmul.mubr.bf16.gmra.mrb[0].mxu0 %v1483
    %v1695 = vpop.f32.mrb[0].mxu0
    %v1696 = vadd.f32 %v260, %v1695
    %v1697 = vpop.f32.mrb[0].mxu0
    %v1698 = vpop.f32.mrb[0].mxu0
    %v1699 = vadd.f32 %v260, %v1698
    %v1700 = vpop.f32.mrb[0].mxu0
    %1701 = vmatprep.mubr.bf16.mxu0 0
    %1702 = vmatmul.mubr.bf16.gmra.mrb[0].mxu0 %v1484
    %v1703 = vpop.f32.mrb[0].mxu0
    %v1704 = vadd.f32 %v260, %v1703
    %v1705 = vpop.f32.mrb[0].mxu0
    %v1706 = vpop.f32.mrb[0].mxu0
    %v1707 = vadd.f32 %v260, %v1706
    %v1708 = vpop.f32.mrb[0].mxu0
    %1709 = vdwg.mxu0
    %v1710 = vmax.f32 %v1584, 0.0
    %v1711 = vmax.f32 %v1587, 0.0
    %v1712 = vmax.f32 %v1592, 0.0
    %v1713 = vmax.f32 %v1595, 0.0
    %v1714 = vmax.f32 %v1600, 0.0
    %v1715 = vmax.f32 %v1603, 0.0
    %v1716 = vmax.f32 %v1608, 0.0
    %v1717 = vmax.f32 %v1611, 0.0
    %v1718 = vmax.f32 %v1616, 0.0
    %v1719 = vmax.f32 %v1619, 0.0
    %v1720 = vmax.f32 %v1624, 0.0
    %v1721 = vmax.f32 %v1627, 0.0
    %v1722 = vmax.f32 %v1632, 0.0
    %v1723 = vmax.f32 %v1635, 0.0
    %v1724 = vmax.f32 %v1640, 0.0
    %v1725 = vmax.f32 %v1643, 0.0
    %v1726 = vmax.f32 %v1648, 0.0
    %v1727 = vmax.f32 %v1651, 0.0
    %v1728 = vmax.f32 %v1656, 0.0
    %v1729 = vmax.f32 %v1659, 0.0
    %v1730 = vmax.f32 %v1664, 0.0
    %v1731 = vmax.f32 %v1667, 0.0
    %v1732 = vmax.f32 %v1672, 0.0
    %v1733 = vmax.f32 %v1675, 0.0
    %v1734 = vmax.f32 %v1680, 0.0
    %v1735 = vmax.f32 %v1683, 0.0
    %v1736 = vmax.f32 %v1688, 0.0
    %v1737 = vmax.f32 %v1691, 0.0
    %v1738 = vmax.f32 %v1696, 0.0
    %v1739 = vmax.f32 %v1699, 0.0
    %v1740 = vmax.f32 %v1704, 0.0
    %v1741 = vmax.f32 %v1707, 0.0
    %v1742 = vpack.c.bf16 %v1711, %v1710
    %v1743 = vpack.c.bf16 %v1713, %v1712
    %v1744 = vpack.c.bf16 %v1715, %v1714
    %v1745 = vpack.c.bf16 %v1717, %v1716
    %v1746 = vpack.c.bf16 %v1719, %v1718
    %v1747 = vpack.c.bf16 %v1721, %v1720
    %v1748 = vpack.c.bf16 %v1723, %v1722
    %v1749 = vpack.c.bf16 %v1725, %v1724
    %v1750 = vpack.c.bf16 %v1727, %v1726
    %v1751 = vpack.c.bf16 %v1729, %v1728
    %v1752 = vpack.c.bf16 %v1731, %v1730
    %v1753 = vpack.c.bf16 %v1733, %v1732
    %v1754 = vpack.c.bf16 %v1735, %v1734
    %v1755 = vpack.c.bf16 %v1737, %v1736
    %v1756 = vpack.c.bf16 %v1739, %v1738
    %v1757 = vpack.c.bf16 %v1741, %v1740
    %1758 = vst [vmem:[#allocation2] sm:$0xff] %v1742
    %1759 = vst [vmem:[#allocation2 + $0x8] sm:$0xff] %v1743
    %1760 = vst [vmem:[#allocation2 + $0x10] sm:$0xff] %v1744
    %1761 = vst [vmem:[#allocation2 + $0x18] sm:$0xff] %v1745
    %1762 = vst [vmem:[#allocation2 + $0x20] sm:$0xff] %v1746
    %1763 = vst [vmem:[#allocation2 + $0x28] sm:$0xff] %v1747
    %1764 = vst [vmem:[#allocation2 + $0x30] sm:$0xff] %v1748
    %1765 = vst [vmem:[#allocation2 + $0x38] sm:$0xff] %v1749
    %1766 = vst [vmem:[#allocation2 + $0x40] sm:$0xff] %v1750
    %1767 = vst [vmem:[#allocation2 + $0x48] sm:$0xff] %v1751
    %1768 = vst [vmem:[#allocation2 + $0x50] sm:$0xff] %v1752
    %1769 = vst [vmem:[#allocation2 + $0x58] sm:$0xff] %v1753
    %1770 = vst [vmem:[#allocation2 + $0x60] sm:$0xff] %v1754
    %1771 = vst [vmem:[#allocation2 + $0x68] sm:$0xff] %v1755
    %1772 = vst [vmem:[#allocation2 + $0x70] sm:$0xff] %v1756
    %1773 = vst [vmem:[#allocation2 + $0x78] sm:$0xff] %v1757
    %v1774 = vld [vmem:[#allocation2] sm:$0xff]
    %v1775 = vld [vmem:[#allocation2 + $0x8] sm:$0xff]
    %v1776 = vld [vmem:[#allocation2 + $0x10] sm:$0xff]
    %v1777 = vld [vmem:[#allocation2 + $0x18] sm:$0xff]
    %v1778 = vunpack.c.l.bf16 %v1774
    %v1779 = vunpack.c.h.bf16 %v1774
    %v1780 = vunpack.c.l.bf16 %v1775
    %v1781 = vunpack.c.h.bf16 %v1775
    %v1782 = vunpack.c.l.bf16 %v1776
    %v1783 = vunpack.c.h.bf16 %v1776
    %v1784 = vunpack.c.l.bf16 %v1777
    %v1785 = vunpack.c.h.bf16 %v1777
    %v1786 = vld [vmem:[#allocation2 + $0x20] sm:$0xff]
    %v1787 = vld [vmem:[#allocation2 + $0x28] sm:$0xff]
    %v1788 = vld [vmem:[#allocation2 + $0x30] sm:$0xff]
    %v1789 = vld [vmem:[#allocation2 + $0x38] sm:$0xff]
    %v1790 = vunpack.c.l.bf16 %v1786
    %v1791 = vunpack.c.h.bf16 %v1786
    %v1792 = vunpack.c.l.bf16 %v1787
    %v1793 = vunpack.c.h.bf16 %v1787
    %v1794 = vunpack.c.l.bf16 %v1788
    %v1795 = vunpack.c.h.bf16 %v1788
    %v1796 = vunpack.c.l.bf16 %v1789
    %v1797 = vunpack.c.h.bf16 %v1789
    %v1798 = vld [vmem:[#allocation2 + $0x40] sm:$0xff]
    %v1799 = vld [vmem:[#allocation2 + $0x48] sm:$0xff]
    %v1800 = vld [vmem:[#allocation2 + $0x50] sm:$0xff]
    %v1801 = vld [vmem:[#allocation2 + $0x58] sm:$0xff]
    %v1802 = vunpack.c.l.bf16 %v1798
    %v1803 = vunpack.c.h.bf16 %v1798
    %v1804 = vunpack.c.l.bf16 %v1799
    %v1805 = vunpack.c.h.bf16 %v1799
    %v1806 = vunpack.c.l.bf16 %v1800
    %v1807 = vunpack.c.h.bf16 %v1800
    %v1808 = vunpack.c.l.bf16 %v1801
    %v1809 = vunpack.c.h.bf16 %v1801
    %v1810 = vld [vmem:[#allocation2 + $0x60] sm:$0xff]
    %v1811 = vld [vmem:[#allocation2 + $0x68] sm:$0xff]
    %v1812 = vld [vmem:[#allocation2 + $0x70] sm:$0xff]
    %v1813 = vld [vmem:[#allocation2 + $0x78] sm:$0xff]
    %v1814 = vunpack.c.l.bf16 %v1810
    %v1815 = vunpack.c.h.bf16 %v1810
    %v1816 = vunpack.c.l.bf16 %v1811
    %v1817 = vunpack.c.h.bf16 %v1811
    %v1818 = vunpack.c.l.bf16 %v1812
    %v1819 = vunpack.c.h.bf16 %v1812
    %v1820 = vunpack.c.l.bf16 %v1813
    %v1821 = vunpack.c.h.bf16 %v1813
    %v1822 = vrot.slane %v1790, 7
    %v1823 = vrot.slane %v1791, 7
    %v1824 = vrot.slane %v1792, 7
    %v1825 = vrot.slane %v1793, 7
    %v1826 = vrot.slane %v1794, 7
    %v1827 = vrot.slane %v1795, 7
    %v1828 = vrot.slane %v1796, 7
    %v1829 = vrot.slane %v1797, 7
    %v1830 = vsel %vm689, %v1828, %v1829
    %v1831 = vsel %vm689, %v1827, %v1828
    %v1832 = vsel %vm689, %v1826, %v1827
    %v1833 = vsel %vm689, %v1825, %v1826
    %v1834 = vsel %vm689, %v1824, %v1825
    %v1835 = vsel %vm689, %v1823, %v1824
    %v1836 = vsel %vm689, %v1822, %v1823
    %v1837 = vsel %vm689, %v1829, %v1822
    %v1838 = vrot.slane %v1814, 7
    %v1839 = vrot.slane %v1815, 7
    %v1840 = vrot.slane %v1816, 7
    %v1841 = vrot.slane %v1817, 7
    %v1842 = vrot.slane %v1818, 7
    %v1843 = vrot.slane %v1819, 7
    %v1844 = vrot.slane %v1820, 7
    %v1845 = vrot.slane %v1821, 7
    %v1846 = vsel %vm689, %v1844, %v1845
    %v1847 = vsel %vm689, %v1843, %v1844
    %v1848 = vsel %vm689, %v1842, %v1843
    %v1849 = vsel %vm689, %v1841, %v1842
    %v1850 = vsel %vm689, %v1840, %v1841
    %v1851 = vsel %vm689, %v1839, %v1840
    %v1852 = vsel %vm689, %v1838, %v1839
    %v1853 = vsel %vm689, %v1845, %v1838
    %v1854 = vmul.f32 %v1778, %v717
    %v1855 = vmul.f32 %v1779, %v717
    %v1856 = vmul.f32 %v1780, %v717
    %v1857 = vmul.f32 %v1781, %v717
    %v1858 = vmul.f32 %v1782, %v717
    %v1859 = vmul.f32 %v1783, %v717
    %v1860 = vmul.f32 %v1784, %v717
    %v1861 = vmul.f32 %v1785, %v717
    %v1862 = vmul.f32 %v1790, %v729
    %v1863 = vmul.f32 %v1791, %v729
    %v1864 = vmul.f32 %v1792, %v729
    %v1865 = vmul.f32 %v1793, %v729
    %v1866 = vmul.f32 %v1794, %v729
    %v1867 = vmul.f32 %v1795, %v729
    %v1868 = vmul.f32 %v1796, %v729
    %v1869 = vmul.f32 %v1797, %v729
    %v1870 = vadd.f32 %v1854, %v1862
    %v1871 = vadd.f32 %v1855, %v1863
    %v1872 = vadd.f32 %v1856, %v1864
    %v1873 = vadd.f32 %v1857, %v1865
    %v1874 = vadd.f32 %v1858, %v1866
    %v1875 = vadd.f32 %v1859, %v1867
    %v1876 = vadd.f32 %v1860, %v1868
    %v1877 = vadd.f32 %v1861, %v1869
    %v1878 = vmul.f32 %v1802, %v749
    %v1879 = vmul.f32 %v1803, %v749
    %v1880 = vmul.f32 %v1804, %v749
    %v1881 = vmul.f32 %v1805, %v749
    %v1882 = vmul.f32 %v1806, %v749
    %v1883 = vmul.f32 %v1807, %v749
    %v1884 = vmul.f32 %v1808, %v749
    %v1885 = vmul.f32 %v1809, %v749
    %v1886 = vadd.f32 %v1870, %v1878
    %v1887 = vadd.f32 %v1871, %v1879
    %v1888 = vadd.f32 %v1872, %v1880
    %v1889 = vadd.f32 %v1873, %v1881
    %v1890 = vadd.f32 %v1874, %v1882
    %v1891 = vadd.f32 %v1875, %v1883
    %v1892 = vadd.f32 %v1876, %v1884
    %v1893 = vadd.f32 %v1877, %v1885
    %v1894 = vmul.f32 %v1814, %v769
    %v1895 = vmul.f32 %v1815, %v769
    %v1896 = vmul.f32 %v1816, %v769
    %v1897 = vmul.f32 %v1817, %v769
    %v1898 = vmul.f32 %v1818, %v769
    %v1899 = vmul.f32 %v1819, %v769
    %v1900 = vmul.f32 %v1820, %v769
    %v1901 = vmul.f32 %v1821, %v769
    %v1902 = vadd.f32 %v1886, %v1894
    %v1903 = vadd.f32 %v1887, %v1895
    %v1904 = vadd.f32 %v1888, %v1896
    %v1905 = vadd.f32 %v1889, %v1897
    %v1906 = vadd.f32 %v1890, %v1898
    %v1907 = vadd.f32 %v1891, %v1899
    %v1908 = vadd.f32 %v1892, %v1900
    %v1909 = vadd.f32 %v1893, %v1901
    %v1910 = vmul.f32 %v1837, %v789
    %v1911 = vmul.f32 %v1836, %v789
    %v1912 = vmul.f32 %v1835, %v789
    %v1913 = vmul.f32 %v1834, %v789
    %v1914 = vmul.f32 %v1833, %v789
    %v1915 = vmul.f32 %v1832, %v789
    %v1916 = vmul.f32 %v1831, %v789
    %v1917 = vmul.f32 %v1830, %v789
    %v1918 = vmul.f32 %v1853, %v801
    %v1919 = vmul.f32 %v1852, %v801
    %v1920 = vmul.f32 %v1851, %v801
    %v1921 = vmul.f32 %v1850, %v801
    %v1922 = vmul.f32 %v1849, %v801
    %v1923 = vmul.f32 %v1848, %v801
    %v1924 = vmul.f32 %v1847, %v801
    %v1925 = vmul.f32 %v1846, %v801
    %v1926 = vadd.f32 %v1910, %v1918
    %v1927 = vadd.f32 %v1911, %v1919
    %v1928 = vadd.f32 %v1912, %v1920
    %v1929 = vadd.f32 %v1913, %v1921
    %v1930 = vadd.f32 %v1914, %v1922
    %v1931 = vadd.f32 %v1915, %v1923
    %v1932 = vadd.f32 %v1916, %v1924
    %v1933 = vadd.f32 %v1917, %v1925
    %v1934 = vmul.f32 %v110, %v1926
    %v1935 = vmul.f32 %v115, %v1927
    %v1936 = vmul.f32 %v120, %v1928
    %v1937 = vmul.f32 %v125, %v1929
    %v1938 = vmul.f32 %v130, %v1930
    %v1939 = vmul.f32 %v135, %v1931
    %v1940 = vmul.f32 %v140, %v1932
    %v1941 = vmul.f32 %v145, %v1933
    %v1942 = vadd.f32 %v1902, %v1934
    %v1943 = vadd.f32 %v1903, %v1935
    %v1944 = vadd.f32 %v1904, %v1936
    %v1945 = vadd.f32 %v1905, %v1937
    %v1946 = vadd.f32 %v1906, %v1938
    %v1947 = vadd.f32 %v1907, %v1939
    %v1948 = vadd.f32 %v1908, %v1940
    %v1949 = vadd.f32 %v1909, %v1941
    %v1950 = vmul.f32 %v1809, %v837
    %v1951 = vmul.f32 %v1802, %v837
    %v1952 = vmul.f32 %v1803, %v837
    %v1953 = vmul.f32 %v1804, %v837
    %v1954 = vmul.f32 %v1805, %v837
    %v1955 = vmul.f32 %v1806, %v837
    %v1956 = vmul.f32 %v1807, %v837
    %v1957 = vmul.f32 %v1808, %v837
    %v1958 = vmul.f32 %v1821, %v849
    %v1959 = vmul.f32 %v1814, %v849
    %v1960 = vmul.f32 %v1815, %v849
    %v1961 = vmul.f32 %v1816, %v849
    %v1962 = vmul.f32 %v1817, %v849
    %v1963 = vmul.f32 %v1818, %v849
    %v1964 = vmul.f32 %v1819, %v849
    %v1965 = vmul.f32 %v1820, %v849
    %v1966 = vadd.f32 %v1950, %v1958
    %v1967 = vadd.f32 %v1951, %v1959
    %v1968 = vadd.f32 %v1952, %v1960
    %v1969 = vadd.f32 %v1953, %v1961
    %v1970 = vadd.f32 %v1954, %v1962
    %v1971 = vadd.f32 %v1955, %v1963
    %v1972 = vadd.f32 %v1956, %v1964
    %v1973 = vadd.f32 %v1957, %v1965
    %v1974 = vmul.f32 %v158, %v1966
    %v1975 = vmul.f32 %v163, %v1967
    %v1976 = vmul.f32 %v168, %v1968
    %v1977 = vmul.f32 %v173, %v1969
    %v1978 = vmul.f32 %v178, %v1970
    %v1979 = vmul.f32 %v183, %v1971
    %v1980 = vmul.f32 %v188, %v1972
    %v1981 = vmul.f32 %v193, %v1973
    %v1982 = vadd.f32 %v1942, %v1974
    %v1983 = vadd.f32 %v1943, %v1975
    %v1984 = vadd.f32 %v1944, %v1976
    %v1985 = vadd.f32 %v1945, %v1977
    %v1986 = vadd.f32 %v1946, %v1978
    %v1987 = vadd.f32 %v1947, %v1979
    %v1988 = vadd.f32 %v1948, %v1980
    %v1989 = vadd.f32 %v1949, %v1981
    %v1990 = vmul.f32 %v1846, %v885
    %v1991 = vmul.f32 %v1853, %v885
    %v1992 = vmul.f32 %v1852, %v885
    %v1993 = vmul.f32 %v1851, %v885
    %v1994 = vmul.f32 %v1850, %v885
    %v1995 = vmul.f32 %v1849, %v885
    %v1996 = vmul.f32 %v1848, %v885
    %v1997 = vmul.f32 %v1847, %v885
    %v1998 = vmul.f32 %v195, %v1990
    %v1999 = vmul.f32 %v196, %v1991
    %v2000 = vmul.f32 %v197, %v1992
    %v2001 = vmul.f32 %v198, %v1993
    %v2002 = vmul.f32 %v199, %v1994
    %v2003 = vmul.f32 %v200, %v1995
    %v2004 = vmul.f32 %v201, %v1996
    %v2005 = vmul.f32 %v202, %v1997
    %v2006 = vadd.f32 %v1982, %v1998
    %v2007 = vadd.f32 %v1983, %v1999
    %v2008 = vadd.f32 %v1984, %v2000
    %v2009 = vadd.f32 %v1985, %v2001
    %v2010 = vadd.f32 %v1986, %v2002
    %v2011 = vadd.f32 %v1987, %v2003
    %v2012 = vadd.f32 %v1988, %v2004
    %v2013 = vadd.f32 %v1989, %v2005
    %v2014 = vadd.f32 %v2006, %v914
    %v2015 = vadd.f32 %v2007, %v914
    %v2016 = vadd.f32 %v2008, %v914
    %v2017 = vadd.f32 %v2009, %v914
    %v2018 = vadd.f32 %v2010, %v914
    %v2019 = vadd.f32 %v2011, %v914
    %v2020 = vadd.f32 %v2012, %v914
    %v2021 = vadd.f32 %v2013, %v914
    %v2022 = vmax.f32 %v2014, 0.0
    %v2023 = vmax.f32 %v2015, 0.0
    %v2024 = vmax.f32 %v2016, 0.0
    %v2025 = vmax.f32 %v2017, 0.0
    %v2026 = vmax.f32 %v2018, 0.0
    %v2027 = vmax.f32 %v2019, 0.0
    %v2028 = vmax.f32 %v2020, 0.0
    %v2029 = vmax.f32 %v2021, 0.0
    %v2030 = vadd.f32 %v2022, %v2023
    %v2031 = vadd.f32 %v2030, %v2024
    %v2032 = vadd.f32 %v2031, %v2025
    %v2033 = vadd.f32 %v2032, %v2026
    %v2034 = vadd.f32 %v2033, %v2027
    %v2035 = vadd.f32 %v2034, %v2028
    %v2036 = vadd.f32 %v2035, %v2029
    %v2037 = vrot.slane %v2036, 4
    %v2038 = vadd.f32 %v2036, %v2037
    %v2039 = vrot.slane %v2038, 2
    %v2040 = vadd.f32 %v2038, %v2039
    %v2041 = vrot.slane %v2040, 1
    %v2042 = vadd.f32 %v2040, %v2041
    %v2043 = vmul.f32 %v2042, 0.015625
    %v2044 = vpack.c.bf16 %v2043, %v2043
    %v2045 = vld [vmem:[%s7] sm:$0xf]
    %v2046 = vld [vmem:[%s7 + $0x4] sm:$0xf]
    %v2047 = vld [vmem:[%s7 + $0x8] sm:$0xf]
    %v2048 = vld [vmem:[%s7 + $0xc] sm:$0xf]
    %v2049 = vld [vmem:[%s7 + $0x10] sm:$0xf]
    %v2050 = vld [vmem:[%s7 + $0x14] sm:$0xf]
    %v2051 = vld [vmem:[%s7 + $0x18] sm:$0xf]
    %v2052 = vld [vmem:[%s7 + $0x1c] sm:$0xf]
    %v2053 = vld [vmem:[%s7 + $0x20] sm:$0xf]
    %v2054 = vld [vmem:[%s7 + $0x24] sm:$0xf]
    %v2055 = vld [vmem:[%s7 + $0x28] sm:$0xf]
    %v2056 = vld [vmem:[%s7 + $0x2c] sm:$0xf]
    %v2057 = vld [vmem:[%s7 + $0x30] sm:$0xf]
    %v2058 = vld [vmem:[%s7 + $0x34] sm:$0xf]
    %v2059 = vld [vmem:[%s7 + $0x38] sm:$0xf]
    %v2060 = vld [vmem:[%s7 + $0x3c] sm:$0xf]
    %v2061 = vld [vmem:[%s8] sm:$0x1]
    %v2078 = vunpack.c.l.b16 %v2045
    %v2079 = vunpack.c.l.b16 %v2046
    %v2080 = vunpack.c.l.b16 %v2047
    %v2081 = vunpack.c.l.b16 %v2048
    %v2082 = vunpack.c.l.b16 %v2049
    %v2083 = vunpack.c.l.b16 %v2050
    %v2084 = vunpack.c.l.b16 %v2051
    %v2085 = vunpack.c.l.b16 %v2052
    %v2086 = vunpack.c.l.b16 %v2053
    %v2087 = vunpack.c.l.b16 %v2054
    %v2088 = vunpack.c.l.b16 %v2055
    %v2089 = vunpack.c.l.b16 %v2056
    %v2090 = vunpack.c.l.b16 %v2057
    %v2091 = vunpack.c.l.b16 %v2058
    %v2092 = vunpack.c.l.b16 %v2059
    %v2093 = vunpack.c.l.b16 %v2060
    %v2094 = vpack.c.b16 %v2079, %v2078
    %v2095 = vpack.c.b16 %v2081, %v2080
    %v2096 = vpack.c.b16 %v2083, %v2082
    %v2097 = vpack.c.b16 %v2085, %v2084
    %v2098 = vpack.c.b16 %v2087, %v2086
    %v2099 = vpack.c.b16 %v2089, %v2088
    %v2100 = vpack.c.b16 %v2091, %v2090
    %v2101 = vpack.c.b16 %v2093, %v2092
    %2110 = vmatprep.subr.bf16.mxu0 0
    %2111 = vmatpush1.bf16.msra.mxu0 %v2094
    %2112 = vmatprep.subr.bf16.mxu0 0
    %2113 = vmatpush1.bf16.msra.mxu0 %v2095
    %2114 = vmatprep.subr.bf16.mxu0 0
    %2115 = vmatpush1.bf16.msra.mxu0 %v2096
    %2116 = vmatprep.subr.bf16.mxu0 0
    %2117 = vmatpush1.bf16.msra.mxu0 %v2097
    %2118 = vmatprep.subr.bf16.mxu0 0
    %2119 = vmatpush1.bf16.msra.mxu0 %v2098
    %2120 = vmatprep.subr.bf16.mxu0 0
    %2121 = vmatpush1.bf16.msra.mxu0 %v2099
    %2122 = vmatprep.subr.bf16.mxu0 0
    %2123 = vmatpush1.bf16.msra.mxu0 %v2100
    %2124 = vmatprep.subr.bf16.mxu0 0
    %2125 = vmatpush1.bf16.msra.mxu0 %v2101
    %2126 = vmatprep.subr.bf16.mxu0 0
    %2127 = vmatpush1.bf16.msra.mxu0 0
    %2128 = vmatprep.subr.bf16.mxu0 0
    %2129 = vmatpush1.bf16.msra.mxu0 0
    %2130 = vmatprep.subr.bf16.mxu0 0
    %2131 = vmatpush1.bf16.msra.mxu0 0
    %2132 = vmatprep.subr.bf16.mxu0 0
    %2133 = vmatpush1.bf16.msra.mxu0 0
    %2134 = vmatprep.subr.bf16.mxu0 0
    %2135 = vmatpush1.bf16.msra.mxu0 0
    %2136 = vmatprep.subr.bf16.mxu0 0
    %2137 = vmatpush1.bf16.msra.mxu0 0
    %2138 = vmatprep.subr.bf16.mxu0 0
    %2139 = vmatpush1.bf16.msra.mxu0 0
    %2140 = vmatprep.subr.bf16.mxu0 0
    %2141 = vmatpush1.bf16.msra.mxu0 0
    %2142 = vmatprep.mubr.bf16.mxu0 0
    %2143 = vmatmul.mubr.bf16.gmra.mrb[0].mxu0 %v2044
    %v2144 = vpop.f32.mrb[0].mxu0
    %v2145 = vadd.f32 %v2061, %v2144
    %v2146 = vpop.f32.mrb[0].mxu0
    %v2147 = vpop.f32.mrb[0].mxu0
    %v2148 = vpop.f32.mrb[0].mxu0
    %2149 = vdwg.mxu0
    %v2150 = vmax.f32 %v2145, 0.0
    %v2151 = vpack.c.bf16 %v2150, %v2150
    %v2152 = vld [vmem:[#allocation8] sm:$0xf]
    %v2153 = vld [vmem:[#allocation8 + $0x4] sm:$0xf]
    %v2154 = vld [vmem:[#allocation8 + $0x8] sm:$0xf]
    %v2155 = vld [vmem:[#allocation8 + $0xc] sm:$0xf]
    %v2156 = vld [vmem:[#allocation8 + $0x10] sm:$0xf]
    %v2157 = vld [vmem:[#allocation8 + $0x14] sm:$0xf]
    %v2158 = vld [vmem:[#allocation8 + $0x18] sm:$0xf]
    %v2159 = vld [vmem:[#allocation8 + $0x1c] sm:$0xf]
    %v2160 = vld [vmem:[#allocation8 + $0x20] sm:$0xf]
    %v2161 = vld [vmem:[#allocation8 + $0x24] sm:$0xf]
    %v2162 = vld [vmem:[#allocation8 + $0x28] sm:$0xf]
    %v2163 = vld [vmem:[#allocation8 + $0x2c] sm:$0xf]
    %v2164 = vld [vmem:[#allocation8 + $0x30] sm:$0xf]
    %v2165 = vld [vmem:[#allocation8 + $0x34] sm:$0xf]
    %v2166 = vld [vmem:[#allocation8 + $0x38] sm:$0xf]
    %v2167 = vld [vmem:[#allocation8 + $0x3c] sm:$0xf]
    %v2168 = vld [vmem:[%s10] sm:$0x1]
    %v2185 = vunpack.c.l.b16 %v2152
    %v2186 = vunpack.c.l.b16 %v2153
    %v2187 = vunpack.c.l.b16 %v2154
    %v2188 = vunpack.c.l.b16 %v2155
    %v2189 = vunpack.c.l.b16 %v2156
    %v2190 = vunpack.c.l.b16 %v2157
    %v2191 = vunpack.c.l.b16 %v2158
    %v2192 = vunpack.c.l.b16 %v2159
    %v2193 = vunpack.c.l.b16 %v2160
    %v2194 = vunpack.c.l.b16 %v2161
    %v2195 = vunpack.c.l.b16 %v2162
    %v2196 = vunpack.c.l.b16 %v2163
    %v2197 = vunpack.c.l.b16 %v2164
    %v2198 = vunpack.c.l.b16 %v2165
    %v2199 = vunpack.c.l.b16 %v2166
    %v2200 = vunpack.c.l.b16 %v2167
    %v2201 = vpack.c.b16 %v2186, %v2185
    %v2202 = vpack.c.b16 %v2188, %v2187
    %v2203 = vpack.c.b16 %v2190, %v2189
    %v2204 = vpack.c.b16 %v2192, %v2191
    %v2205 = vpack.c.b16 %v2194, %v2193
    %v2206 = vpack.c.b16 %v2196, %v2195
    %v2207 = vpack.c.b16 %v2198, %v2197
    %v2208 = vpack.c.b16 %v2200, %v2199
    %2217 = vmatprep.subr.bf16.mxu0 0
    %2218 = vmatpush1.bf16.msra.mxu0 %v2201
    %2219 = vmatprep.subr.bf16.mxu0 0
    %2220 = vmatpush1.bf16.msra.mxu0 %v2202
    %2221 = vmatprep.subr.bf16.mxu0 0
    %2222 = vmatpush1.bf16.msra.mxu0 %v2203
    %2223 = vmatprep.subr.bf16.mxu0 0
    %2224 = vmatpush1.bf16.msra.mxu0 %v2204
    %2225 = vmatprep.subr.bf16.mxu0 0
    %2226 = vmatpush1.bf16.msra.mxu0 %v2205
    %2227 = vmatprep.subr.bf16.mxu0 0
    %2228 = vmatpush1.bf16.msra.mxu0 %v2206
    %2229 = vmatprep.subr.bf16.mxu0 0
    %2230 = vmatpush1.bf16.msra.mxu0 %v2207
    %2231 = vmatprep.subr.bf16.mxu0 0
    %2232 = vmatpush1.bf16.msra.mxu0 %v2208
    %2233 = vmatprep.subr.bf16.mxu0 0
    %2234 = vmatpush1.bf16.msra.mxu0 0
    %2235 = vmatprep.subr.bf16.mxu0 0
    %2236 = vmatpush1.bf16.msra.mxu0 0
    %2237 = vmatprep.subr.bf16.mxu0 0
    %2238 = vmatpush1.bf16.msra.mxu0 0
    %2239 = vmatprep.subr.bf16.mxu0 0
    %2240 = vmatpush1.bf16.msra.mxu0 0
    %2241 = vmatprep.subr.bf16.mxu0 0
    %2242 = vmatpush1.bf16.msra.mxu0 0
    %2243 = vmatprep.subr.bf16.mxu0 0
    %2244 = vmatpush1.bf16.msra.mxu0 0
    %2245 = vmatprep.subr.bf16.mxu0 0
    %2246 = vmatpush1.bf16.msra.mxu0 0
    %2247 = vmatprep.subr.bf16.mxu0 0
    %2248 = vmatpush1.bf16.msra.mxu0 0
    %2249 = vmatprep.mubr.bf16.mxu0 0
    %2250 = vmatmul.mubr.bf16.gmra.mrb[0].mxu0 %v2151
    %v2251 = vpop.f32.mrb[0].mxu0
    %v2252 = vadd.f32 %v2168, %v2251
    %v2253 = vpop.f32.mrb[0].mxu0
    %v2254 = vpop.f32.mrb[0].mxu0
    %v2255 = vpop.f32.mrb[0].mxu0
    %2256 = vdwg.mxu0
    %v2257 = vxor.u32 %v2252, 2147483648
    %v2258 = vmul.f32 %v2257, 1.442695
    %v2259 = vpow.pop %v2258
    %v2260 = vadd.f32 %v2259, 1.0
    %v2261 = vrcp.pop %v2260
    %v2262 = vmul.f32 1.0, %v2261
    %v2263 = vlaneseq
    %v2264 = vshrl.u32 %v2263, 7
    %v2265 = vsub.s32 0, %v2264
    %v2266 = vrot.slane %v2262, %v2265
    %v2267 = vmul.f32 %v2022, %v2266
    %v2268 = vmul.f32 %v2023, %v2266
    %v2269 = vmul.f32 %v2024, %v2266
    %v2270 = vmul.f32 %v2025, %v2266
    %v2271 = vmul.f32 %v2026, %v2266
    %v2272 = vmul.f32 %v2027, %v2266
    %v2273 = vmul.f32 %v2028, %v2266
    %v2274 = vmul.f32 %v2029, %v2266
    %v2275 = vpack.c.bf16 %v2268, %v2267
    %v2276 = vpack.c.bf16 %v2270, %v2269
    %v2277 = vpack.c.bf16 %v2272, %v2271
    %v2278 = vpack.c.bf16 %v2274, %v2273
    %v2279 = vld [vmem:[#allocation9] sm:$0xf]
    %v2280 = vld [vmem:[#allocation9 + $0x4] sm:$0xf]
    %v2281 = vld [vmem:[#allocation9 + $0x8] sm:$0xf]
    %v2282 = vld [vmem:[#allocation9 + $0xc] sm:$0xf]
    %v2283 = vld [vmem:[#allocation9 + $0x10] sm:$0xf]
    %v2284 = vld [vmem:[#allocation9 + $0x14] sm:$0xf]
    %v2285 = vld [vmem:[#allocation9 + $0x18] sm:$0xf]
    %v2286 = vld [vmem:[#allocation9 + $0x1c] sm:$0xf]
    %v2287 = vld [vmem:[#allocation9 + $0x20] sm:$0xf]
    %v2288 = vld [vmem:[#allocation9 + $0x24] sm:$0xf]
    %v2289 = vld [vmem:[#allocation9 + $0x28] sm:$0xf]
    %v2290 = vld [vmem:[#allocation9 + $0x2c] sm:$0xf]
    %v2291 = vld [vmem:[#allocation9 + $0x30] sm:$0xf]
    %v2292 = vld [vmem:[#allocation9 + $0x34] sm:$0xf]
    %v2293 = vld [vmem:[#allocation9 + $0x38] sm:$0xf]
    %v2294 = vld [vmem:[#allocation9 + $0x3c] sm:$0xf]
    %v2311 = vunpack.c.l.b16 %v2279
    %v2312 = vunpack.c.l.b16 %v2280
    %v2313 = vunpack.c.l.b16 %v2281
    %v2314 = vunpack.c.l.b16 %v2282
    %v2315 = vunpack.c.l.b16 %v2283
    %v2316 = vunpack.c.l.b16 %v2284
    %v2317 = vunpack.c.l.b16 %v2285
    %v2318 = vunpack.c.l.b16 %v2286
    %v2319 = vunpack.c.l.b16 %v2287
    %v2320 = vunpack.c.l.b16 %v2288
    %v2321 = vunpack.c.l.b16 %v2289
    %v2322 = vunpack.c.l.b16 %v2290
    %v2323 = vunpack.c.l.b16 %v2291
    %v2324 = vunpack.c.l.b16 %v2292
    %v2325 = vunpack.c.l.b16 %v2293
    %v2326 = vunpack.c.l.b16 %v2294
    %v2327 = vpack.c.b16 %v2312, %v2311
    %v2328 = vpack.c.b16 %v2314, %v2313
    %v2329 = vpack.c.b16 %v2316, %v2315
    %v2330 = vpack.c.b16 %v2318, %v2317
    %v2331 = vpack.c.b16 %v2320, %v2319
    %v2332 = vpack.c.b16 %v2322, %v2321
    %v2333 = vpack.c.b16 %v2324, %v2323
    %v2334 = vpack.c.b16 %v2326, %v2325
    %2343 = vmatprep.subr.bf16.mxu0 0
    %2344 = vmatpush1.bf16.msra.mxu0 %v2327
    %2345 = vmatprep.subr.bf16.mxu0 0
    %2346 = vmatpush1.bf16.msra.mxu0 %v2328
    %2347 = vmatprep.subr.bf16.mxu0 0
    %2348 = vmatpush1.bf16.msra.mxu0 %v2329
    %2349 = vmatprep.subr.bf16.mxu0 0
    %2350 = vmatpush1.bf16.msra.mxu0 %v2330
    %2351 = vmatprep.subr.bf16.mxu0 0
    %2352 = vmatpush1.bf16.msra.mxu0 %v2331
    %2353 = vmatprep.subr.bf16.mxu0 0
    %2354 = vmatpush1.bf16.msra.mxu0 %v2332
    %2355 = vmatprep.subr.bf16.mxu0 0
    %2356 = vmatpush1.bf16.msra.mxu0 %v2333
    %2357 = vmatprep.subr.bf16.mxu0 0
    %2358 = vmatpush1.bf16.msra.mxu0 %v2334
    %2359 = vmatprep.subr.bf16.mxu0 0
    %2360 = vmatpush1.bf16.msra.mxu0 0
    %2361 = vmatprep.subr.bf16.mxu0 0
    %2362 = vmatpush1.bf16.msra.mxu0 0
    %2363 = vmatprep.subr.bf16.mxu0 0
    %2364 = vmatpush1.bf16.msra.mxu0 0
    %2365 = vmatprep.subr.bf16.mxu0 0
    %2366 = vmatpush1.bf16.msra.mxu0 0
    %2367 = vmatprep.subr.bf16.mxu0 0
    %2368 = vmatpush1.bf16.msra.mxu0 0
    %2369 = vmatprep.subr.bf16.mxu0 0
    %2370 = vmatpush1.bf16.msra.mxu0 0
    %2371 = vmatprep.subr.bf16.mxu0 0
    %2372 = vmatpush1.bf16.msra.mxu0 0
    %2373 = vmatprep.subr.bf16.mxu0 0
    %2374 = vmatpush1.bf16.msra.mxu0 0
    %2375 = vmatprep.mubr.bf16.mxu0 0
    %2376 = vmatmul.mubr.bf16.gmra.mrb[0].mxu0 %v2275
    %v2377 = vpop.f32.mrb[0].mxu0
    %v2378 = vadd.f32 %v1201, %v2377
    %v2379 = vpop.f32.mrb[0].mxu0
    %v2380 = vpop.f32.mrb[0].mxu0
    %v2381 = vadd.f32 %v1201, %v2380
    %v2382 = vpop.f32.mrb[0].mxu0
    %2383 = vmatprep.mubr.bf16.mxu0 0
    %2384 = vmatmul.mubr.bf16.gmra.mrb[0].mxu0 %v2276
    %v2385 = vpop.f32.mrb[0].mxu0
    %v2386 = vadd.f32 %v1201, %v2385
    %v2387 = vpop.f32.mrb[0].mxu0
    %v2388 = vpop.f32.mrb[0].mxu0
    %v2389 = vadd.f32 %v1201, %v2388
    %v2390 = vpop.f32.mrb[0].mxu0
    %2391 = vmatprep.mubr.bf16.mxu0 0
    %2392 = vmatmul.mubr.bf16.gmra.mrb[0].mxu0 %v2277
    %v2393 = vpop.f32.mrb[0].mxu0
    %v2394 = vadd.f32 %v1201, %v2393
    %v2395 = vpop.f32.mrb[0].mxu0
    %v2396 = vpop.f32.mrb[0].mxu0
    %v2397 = vadd.f32 %v1201, %v2396
    %v2398 = vpop.f32.mrb[0].mxu0
    %2399 = vmatprep.mubr.bf16.mxu0 0
    %2400 = vmatmul.mubr.bf16.gmra.mrb[0].mxu0 %v2278
    %v2401 = vpop.f32.mrb[0].mxu0
    %v2402 = vadd.f32 %v1201, %v2401
    %v2403 = vpop.f32.mrb[0].mxu0
    %v2404 = vpop.f32.mrb[0].mxu0
    %v2405 = vadd.f32 %v1201, %v2404
    %v2406 = vpop.f32.mrb[0].mxu0
    %2407 = vdwg.mxu0
    %v2408 = vpack.c.bf16 %v2381, %v2378
    %v2409 = vpack.c.bf16 %v2389, %v2386
    %v2410 = vpack.c.bf16 %v2397, %v2394
    %v2411 = vpack.c.bf16 %v2405, %v2402
    %v2416 = vunpack.c.l.b16 %v2408
    %v2417 = vunpack.c.h.b16 %v2408
    %v2418 = vunpack.c.l.b16 %v2409
    %v2419 = vunpack.c.h.b16 %v2409
    %v2420 = vunpack.c.l.b16 %v2410
    %v2421 = vunpack.c.h.b16 %v2410
    %v2422 = vunpack.c.l.b16 %v2411
    %v2423 = vunpack.c.h.b16 %v2411
    %v2424 = vpack.c.b16 %v2416, %v2416
    %v2425 = vpack.c.b16 %v2417, %v2417
    %v2426 = vpack.c.b16 %v2418, %v2418
    %v2427 = vpack.c.b16 %v2419, %v2419
    %v2428 = vpack.c.b16 %v2420, %v2420
    %v2429 = vpack.c.b16 %v2421, %v2421
    %v2430 = vpack.c.b16 %v2422, %v2422
    %v2431 = vpack.c.b16 %v2423, %v2423
    %s2440 = scalar_lea.vmem [#allocation11], 32
    %2441 = vst [vmem:[%s2440] sm:$0xf] %v2424
    %2442 = vst [vmem:[%s2440 + $0x4] sm:$0xf] %v2425
    %2443 = vst [vmem:[%s2440 + $0x8] sm:$0xf] %v2426
    %2444 = vst [vmem:[%s2440 + $0xc] sm:$0xf] %v2427
    %2445 = vst [vmem:[%s2440 + $0x10] sm:$0xf] %v2428
    %2446 = vst [vmem:[%s2440 + $0x14] sm:$0xf] %v2429
    %2447 = vst [vmem:[%s2440 + $0x18] sm:$0xf] %v2430
    %2448 = vst [vmem:[%s2440 + $0x1c] sm:$0xf] %v2431
    // Predicated region
    $region70: #{tpu_custom_call.1} parent=1 // pred_check
      _
    $region71: #{tpu_custom_call.1} parent=1 // pred_check_branch
      %2450 = sbr.rel (0) target = $region73
    $region72: #{tpu_custom_call.1} parent=1 // pred_region
      %s2452 = ssub.s32 1024, 1024
      %2453 = vsyncadd [#allocation5], %s2452
      %s2454 = sshll.u32 [#allocation11], 4
      %s2455 = int_to_ptr.vmem [resolvable:$true] %s2454
      %2460 = dma.vmem_to_hbm [thread:$0]  %s2455, 1024, %s13, [#allocation5], 64, 64, 4
    $region73: #{tpu_custom_call.1} parent=1 // pred_fallthru
      _
    // Predicated region
    $region74: #{tpu_custom_call.1} parent=1 // pred_check
      _
    $region75: #{tpu_custom_call.1} parent=1 // pred_check_branch
      %2462 = sbr.rel (0) target = $region77
    $region76: #{tpu_custom_call.1} parent=1 // pred_region
      %2463 = dma.done [#allocation5], 1024
    $region77: #{tpu_custom_call.1} parent=1 // pred_fallthru
      _
    %2464 = vsyncpa [#allocation4], 1
    %2465 = vsyncpa [#allocation7], 1
    %2466 = vsyncpa [#allocation10], 1
    %2467 = vsyncpa [#allocation5], 1

</llo_original>
